<compile_context>
chip_gen: v5e
topology: v5e:2x2
jax: 0.10.0
libtpu: 0.0.40
codegen_flags: <defaults>
</compile_context>

<pallas_src>
import math

import numpy as np

import jax
import jax.numpy as jnp
from jax import lax
from jax.experimental import pallas as pl
from jax.experimental.pallas import tpu as pltpu


MATMUL_DTYPE = jnp.float32      # jnp.bfloat16 for real sizes (relaxes the 1e-4 check)
_LEAKY_SLOPE = 0.2
_BN_EPS = 1e-5
_K = 4                          # every conv in this module is 4x4
_VMEM_SPEC = pl.BlockSpec(memory_space=pltpu.MemorySpace.VMEM)


# -----------------------------------------------------------------------------
# Fused kernel: stage0 conv+LReLU -> stage1 conv+BN+LReLU -> conv1/conv2 heads.
# Three matmuls total; gathers are static contiguous VMEM slice copies.
# -----------------------------------------------------------------------------
def _fused_encoder_kernel(p0_ref, w0_ref, w1_ref, gamma_ref, beta_ref,
                          wh_ref, bh_ref, o_ref, p1_ref, zw_ref):
    f32 = jnp.float32
    ngf = w0_ref.shape[1]
    c1 = w1_ref.shape[1]                  # 2*ngf
    kk1 = w1_ref.shape[0] // ngf          # 16 pyramid-conv kernel offsets
    n_pos = wh_ref.shape[0] // c1         # 16 spatial positions feeding the heads
    m1 = p1_ref.shape[0]                  # n_pos * batch
    nb = m1 // n_pos                      # batch

    # ---- Stage 0: Conv2d(nc->ngf,4,2,1,bias=False) + LeakyReLU --------------
    # ONE matmul over all (stage-1-patch-duplicated) im2col rows.  Host orders
    # the rows (q, r, n) so every stage-1 offset q owns one contiguous block;
    # padded positions arrive as all-zero rows -> conv 0 -> leaky 0 (correct).
    y0 = jnp.dot(p0_ref[...], w0_ref[...], preferred_element_type=f32)
    y0 = jnp.maximum(y0, _LEAKY_SLOPE * y0)           # LeakyReLU(0.2)
    y0 = y0.astype(MATMUL_DTYPE)                      # single cast for the stage

    # ---- Stage-1 im2col: 16 contiguous row blocks -> 16 lane slices of P1 ---
    # Pure static VMEM copies (no gather matmuls, no transposes, no reshapes).
    for q in range(kk1):                              # static unroll, copies only
        p1_ref[:, q * ngf:(q + 1) * ngf] = y0[q * m1:(q + 1) * m1, :]

    # ---- Stage 1: ONE K = 16*ngf (=128) matmul (K-concatenated offsets) -----
    y1 = jnp.dot(p1_ref[...], w1_ref[...], preferred_element_type=f32)   # (m1, c1)

    # ---- BatchNorm2d(2*ngf): training-mode stats over the FULL batch*spatial
    #      rows; two-pass variance to avoid catastrophic cancellation. --------
    inv_m = 1.0 / m1
    mean = jnp.sum(y1, axis=0, keepdims=True) * inv_m
    d = y1 - mean
    var = jnp.sum(d * d, axis=0, keepdims=True) * inv_m
    z = d * lax.rsqrt(var + _BN_EPS)
    z = z * gamma_ref[...] + beta_ref[...]
    z = jnp.maximum(z, _LEAKY_SLOPE * z)              # LeakyReLU(0.2)
    z = z.astype(MATMUL_DTYPE)

    # ---- Heads: conv1 & conv2 fused into ONE K = 16*2ngf (=256) matmul ------
    # Static copies lay each spatial position into its lane slice of the
    # (8, 256) per-sample slab; output is a full (8,128) tile (unmasked store).
    zw_ref[...] = jnp.zeros_like(zw_ref)
    for r in range(n_pos):
        zw_ref[0:nb, r * c1:(r + 1) * c1] = z[r * nb:(r + 1) * nb, :]
    out = jnp.dot(zw_ref[...], wh_ref[...], preferred_element_type=f32)
    o_ref[...] = out + bh_ref[...]


# -----------------------------------------------------------------------------
# Host-side glue: im2col + static (batch-independent) patch index tables.
# -----------------------------------------------------------------------------
def _im2col_nchw(x, k, stride, pad):
    """NCHW -> (N, Ho, Wo, C*k*k); column order (c, kh, kw) matches PyTorch OIHW."""
    N, C, H, W = x.shape
    xp = jnp.pad(x, ((0, 0), (0, 0), (pad, pad), (pad, pad)))
    Ho = (H + 2 * pad - k) // stride + 1
    Wo = (W + 2 * pad - k) // stride + 1
    cols = []
    for i in range(k):
        for j in range(k):
            cols.append(xp[:, :, i:i + stride * Ho:stride, j:j + stride * Wo:stride])
    p = jnp.stack(cols, axis=2).reshape(N, C * k * k, Ho, Wo)
    return p.transpose(0, 2, 3, 1), Ho, Wo


def _stage1_patch_index(h_in, w_in, h_out, w_out, k, stride, pad):
    """Static gather index/mask [q, r] for the stage-1 conv patches (batch-free)."""
    idx = np.zeros((k * k, h_out * w_out), np.int32)
    msk = np.zeros((k * k, h_out * w_out), np.float32)
    for kh in range(k):
        for kw in range(k):
            q = kh * k + kw
            for oh in range(h_out):
                for ow in range(w_out):
                    ih = oh * stride - pad + kh
                    iw = ow * stride - pad + kw
                    if 0 <= ih < h_in and 0 <= iw < w_in:
                        idx[q, oh * w_out + ow] = ih * w_in + iw
                        msk[q, oh * w_out + ow] = 1.0
    return idx, msk


def encoder_forward(x, params):
    """Forward pass of _Encoder for imageSize=16 (one pyramid stage)."""
    N, nc, H, W = x.shape
    assert H == 16 and W == 16, "this Pallas port implements the imageSize=16 config"
    ngf = params["w0"].shape[0]
    c1 = 2 * ngf
    nz = params["bc1"].shape[0]
    k = _K
    mm = MATMUL_DTYPE

    # Stage-0 im2col (host side, O(batch)).
    p0, h0, w0 = _im2col_nchw(x, k=k, stride=2, pad=1)           # (N, 8, 8, nc*16)
    h1 = (h0 + 2 - k) // 2 + 1
    w1 = (w0 + 2 - k) // 2 + 1
    n_pos = h1 * w1                                              # 16
    kk = k * k                                                   # 16

    # Duplicate/reorder the stage-0 patch rows to (q, r, n) so the in-kernel
    # stage-1 im2col is 16 contiguous block copies (padding rows are zeroed).
    idx, msk = _stage1_patch_index(h0, w0, h1, w1, k, stride=2, pad=1)
    p0 = p0.reshape(N, h0 * w0, nc * kk)
    p0g = p0[:, idx.reshape(-1), :] * msk.reshape(-1)[None, :, None]   # (N, kk*n_pos, K0)
    p0dup = p0g.transpose(1, 0, 2).reshape(kk * n_pos * N, nc * kk).astype(mm)

    w0flat = params["w0"].reshape(ngf, -1).T.astype(mm)                 # (nc*16, ngf)
    # K-concatenated stage-1 weight: rows ordered (q, c_in).
    w1cat = jnp.transpose(params["w1"], (2, 3, 1, 0)).reshape(kk * ngf, c1).astype(mm)
    gamma = params["gamma"].reshape(1, -1).astype(jnp.float32)
    beta = params["beta"].reshape(1, -1).astype(jnp.float32)

    # Heads: conv1/conv2 fused; K ordered (spatial r, c_in); lanes padded to 128.
    cpad = max(128, pl.cdiv(2 * nz, 128) * 128)
    whcat = jnp.concatenate([params["wc1"], params["wc2"]], axis=0)     # (2nz, c1, 4, 4)
    whg = jnp.transpose(whcat, (2, 3, 1, 0)).reshape(n_pos * c1, 2 * nz)
    whg = jnp.pad(whg, ((0, 0), (0, cpad - 2 * nz))).astype(mm)
    bh = jnp.pad(jnp.concatenate([params["bc1"], params["bc2"]]),
                 (0, cpad - 2 * nz)).reshape(1, cpad).astype(jnp.float32)

    n_out = max(8, pl.cdiv(N, 8) * 8)          # (8,128)-aligned output rows

    args = (p0dup, w0flat, w1cat, gamma, beta, whg, bh)

    # Whole-array VMEM residency (no grid): guard against the tightest scoped
    # default (v5e 16 MiB).  Everything is now O(batch), so this only trips at
    # genuinely large batch/ngf, at which point the gridded path (TODO) is due.
    itemsize = np.dtype(mm).itemsize
    vmem_bytes = sum(int(np.prod(a.shape)) * a.dtype.itemsize for a in args)
    vmem_bytes += (n_pos * N * kk * ngf + n_out * n_pos * c1) * itemsize   # scratches
    vmem_bytes += n_out * cpad * 4                                         # output
    assert vmem_bytes < 16 * 1024 * 1024, (
        "whole-array VMEM residency exceeds the v5e scoped default; grid over "
        "batch (see TODO below) before scaling batch/ngf up")

    flops = 2 * (p0dup.shape[0] * p0dup.shape[1] * ngf
                 + n_pos * N * kk * ngf * c1
                 + n_out * n_pos * c1 * cpad)

    # TODO(synk): for large batch, grid over batch blocks with batch-blocked
    # BlockSpecs (pipelined p0 stream) and a two-pass BN (accumulate sum/sumsq
    # across blocks on an "arbitrary" axis, then normalize + heads), plus
    # dimension_semantics=("parallel", ...) so v7x's two TensorCores split the
    # per-sample work.  At batch=2 a grid only adds fixed per-step overhead.
    out = pl.pallas_call(
        _fused_encoder_kernel,
        out_shape=jax.ShapeDtypeStruct((n_out, cpad), jnp.float32),
        in_specs=[_VMEM_SPEC] * len(args),
        out_specs=_VMEM_SPEC,
        scratch_shapes=[pltpu.VMEM((n_pos * N, kk * ngf), mm),   # P1 (K-concat patches)
                        pltpu.VMEM((n_out, n_pos * c1), mm)],    # per-sample head slab
        cost_estimate=pl.CostEstimate(flops=int(flops),
                                      transcendentals=int(2 * c1),
                                      bytes_accessed=int(vmem_bytes)),
    )(*args)

    out1 = out[:N, :nz].reshape(N, nz, 1, 1)
    out2 = out[:N, nz:2 * nz].reshape(N, nz, 1, 1)
    return [out1, out2]


# -----------------------------------------------------------------------------
# Pure-JAX reference (lax convs) for correctness check
# -----------------------------------------------------------------------------
def reference_forward(x, params):
    dn = ("NCHW", "OIHW", "NCHW")
    y = lax.conv_general_dilated(x, params["w0"], (2, 2), ((1, 1), (1, 1)), dimension_numbers=dn)
    y = jnp.where(y > 0, y, 0.2 * y)
    y = lax.conv_general_dilated(y, params["w1"], (2, 2), ((1, 1), (1, 1)), dimension_numbers=dn)
    mean = y.mean(axis=(0, 2, 3), keepdims=True)
    var = ((y - mean) ** 2).mean(axis=(0, 2, 3), keepdims=True)
    y = (y - mean) * lax.rsqrt(var + 1e-5)
    y = y * params["gamma"].reshape(1, -1, 1, 1) + params["beta"].reshape(1, -1, 1, 1)
    y = jnp.where(y > 0, y, 0.2 * y)
    z1 = lax.conv_general_dilated(y, params["wc1"], (1, 1), "VALID", dimension_numbers=dn)
    z1 = z1 + params["bc1"].reshape(1, -1, 1, 1)
    z2 = lax.conv_general_dilated(y, params["wc2"], (1, 1), "VALID", dimension_numbers=dn)
    z2 = z2 + params["bc2"].reshape(1, -1, 1, 1)
    return [z1, z2]


if __name__ == "__main__":
    image_size = 16
    n = math.log2(image_size)
    assert n == round(n) and n >= 3
    nc, ngf, nz = 3, 8, 32
    batch = 2

    key = jax.random.PRNGKey(0)
    ks = jax.random.split(key, 8)
    params = {
        # encoder 'input-conv' : Conv2d(nc, ngf, 4, 2, 1, bias=False)
        "w0": 0.05 * jax.random.normal(ks[0], (ngf, nc, 4, 4), jnp.float32),
        # pyramid conv         : Conv2d(ngf, 2*ngf, 4, 2, 1, bias=False)
        "w1": 0.05 * jax.random.normal(ks[1], (ngf * 2, ngf, 4, 4), jnp.float32),
        # BatchNorm2d(2*ngf) affine params
        "gamma": 1.0 + 0.1 * jax.random.normal(ks[2], (ngf * 2,), jnp.float32),
        "beta": 0.1 * jax.random.normal(ks[3], (ngf * 2,), jnp.float32),
        # conv1 / conv2        : Conv2d(2*ngf, nz, 4) with bias
        "wc1": 0.05 * jax.random.normal(ks[4], (nz, ngf * 2, 4, 4), jnp.float32),
        "bc1": 0.05 * jax.random.normal(ks[5], (nz,), jnp.float32),
        "wc2": 0.05 * jax.random.normal(ks[6], (nz, ngf * 2, 4, 4), jnp.float32),
        "bc2": 0.05 * jax.random.normal(ks[7], (nz,), jnp.float32),
    }

    x = jax.random.normal(key, (batch, nc, image_size, image_size), jnp.float32)

    fwd = jax.jit(encoder_forward)
    out1, out2 = fwd(x, params)
    jax.block_until_ready(out1)
    jax.block_until_ready(out2)

    ref1, ref2 = reference_forward(x, params)
    assert out1.shape == (batch, nz, 1, 1) and out2.shape == (batch, nz, 1, 1)
    assert jnp.allclose(out1, ref1, atol=1e-4, rtol=1e-4)
    assert jnp.allclose(out2, ref2, atol=1e-4, rtol=1e-4)

    print("KERNEL_OK")
</pallas_src>

<mosaic_0001>
module attributes {stable_mosaic.version = 11 : i64} {
  func.func @_fused_encoder_kernel(%arg0: memref<512x48xf32, #tpu.memory_space<vmem>>, %arg1: memref<48x8xf32, #tpu.memory_space<vmem>>, %arg2: memref<128x16xf32, #tpu.memory_space<vmem>>, %arg3: memref<1x16xf32, #tpu.memory_space<vmem>>, %arg4: memref<1x16xf32, #tpu.memory_space<vmem>>, %arg5: memref<256x128xf32, #tpu.memory_space<vmem>>, %arg6: memref<1x128xf32, #tpu.memory_space<vmem>>, %arg7: memref<8x128xf32, #tpu.memory_space<vmem>>, %arg8: memref<32x128xf32, #tpu.memory_space<vmem>>, %arg9: memref<8x256xf32, #tpu.memory_space<vmem>>) attributes {dimension_semantics = [], scalar_prefetch = 0 : i64, scratch_operands = 2 : i64, tpu.core_type = #tpu.core_type<tc>} {
    %c0 = arith.constant 0 : index
    %c0_0 = arith.constant 0 : index
    %0 = vector.load %arg0[%c0, %c0_0] : memref<512x48xf32, #tpu.memory_space<vmem>>, vector<512x48xf32>
    %c0_1 = arith.constant 0 : index
    %c0_2 = arith.constant 0 : index
    %1 = vector.load %arg1[%c0_1, %c0_2] : memref<48x8xf32, #tpu.memory_space<vmem>>, vector<48x8xf32>
    %cst = arith.constant dense<0.000000e+00> : vector<512x8xf32>
    %2 = tpu.matmul %0, %1, %cst {dimension_numbers = #tpu.dot_dimension_numbers<[1], [0], [0], [1], [0, 0, 1, 1], [], []>} : vector<512x48xf32>, vector<48x8xf32>, vector<512x8xf32> -> vector<512x8xf32>
    %cst_3 = arith.constant 2.000000e-01 : f32
    %3 = vector.broadcast %cst_3 : f32 to vector<512x8xf32>
    %4 = arith.mulf %3, %2 : vector<512x8xf32>
    %5 = arith.maximumf %2, %4 : vector<512x8xf32>
    %6 = vector.extract_strided_slice %5 {offsets = [0, 0], sizes = [32, 8], strides = [1, 1]} : vector<512x8xf32> to vector<32x8xf32>
    %c0_4 = arith.constant 0 : index
    %c0_5 = arith.constant 0 : index
    %7 = vector.load %arg8[%c0_4, %c0_5] : memref<32x128xf32, #tpu.memory_space<vmem>>, vector<32x8xf32>
    tpu.vector_store %arg8[%c0_4, %c0_5], %6 {strides = array<i32>} : memref<32x128xf32, #tpu.memory_space<vmem>>, vector<32x8xf32>,
    %8 = vector.extract_strided_slice %5 {offsets = [32, 0], sizes = [32, 8], strides = [1, 1]} : vector<512x8xf32> to vector<32x8xf32>
    %c0_6 = arith.constant 0 : index
    %c8 = arith.constant 8 : index
    %9 = vector.load %arg8[%c0_6, %c8] : memref<32x128xf32, #tpu.memory_space<vmem>>, vector<32x8xf32>
    tpu.vector_store %arg8[%c0_6, %c8], %8 {strides = array<i32>} : memref<32x128xf32, #tpu.memory_space<vmem>>, vector<32x8xf32>,
    %10 = vector.extract_strided_slice %5 {offsets = [64, 0], sizes = [32, 8], strides = [1, 1]} : vector<512x8xf32> to vector<32x8xf32>
    %c0_7 = arith.constant 0 : index
    %c16 = arith.constant 16 : index
    %11 = vector.load %arg8[%c0_7, %c16] : memref<32x128xf32, #tpu.memory_space<vmem>>, vector<32x8xf32>
    tpu.vector_store %arg8[%c0_7, %c16], %10 {strides = array<i32>} : memref<32x128xf32, #tpu.memory_space<vmem>>, vector<32x8xf32>,
    %12 = vector.extract_strided_slice %5 {offsets = [96, 0], sizes = [32, 8], strides = [1, 1]} : vector<512x8xf32> to vector<32x8xf32>
    %c0_8 = arith.constant 0 : index
    %c24 = arith.constant 24 : index
    %13 = vector.load %arg8[%c0_8, %c24] : memref<32x128xf32, #tpu.memory_space<vmem>>, vector<32x8xf32>
    tpu.vector_store %arg8[%c0_8, %c24], %12 {strides = array<i32>} : memref<32x128xf32, #tpu.memory_space<vmem>>, vector<32x8xf32>,
    %14 = vector.extract_strided_slice %5 {offsets = [128, 0], sizes = [32, 8], strides = [1, 1]} : vector<512x8xf32> to vector<32x8xf32>
    %c0_9 = arith.constant 0 : index
    %c32 = arith.constant 32 : index
    %15 = vector.load %arg8[%c0_9, %c32] : memref<32x128xf32, #tpu.memory_space<vmem>>, vector<32x8xf32>
    tpu.vector_store %arg8[%c0_9, %c32], %14 {strides = array<i32>} : memref<32x128xf32, #tpu.memory_space<vmem>>, vector<32x8xf32>,
    %16 = vector.extract_strided_slice %5 {offsets = [160, 0], sizes = [32, 8], strides = [1, 1]} : vector<512x8xf32> to vector<32x8xf32>
    %c0_10 = arith.constant 0 : index
    %c40 = arith.constant 40 : index
    %17 = vector.load %arg8[%c0_10, %c40] : memref<32x128xf32, #tpu.memory_space<vmem>>, vector<32x8xf32>
    tpu.vector_store %arg8[%c0_10, %c40], %16 {strides = array<i32>} : memref<32x128xf32, #tpu.memory_space<vmem>>, vector<32x8xf32>,
    %18 = vector.extract_strided_slice %5 {offsets = [192, 0], sizes = [32, 8], strides = [1, 1]} : vector<512x8xf32> to vector<32x8xf32>
    %c0_11 = arith.constant 0 : index
    %c48 = arith.constant 48 : index
    %19 = vector.load %arg8[%c0_11, %c48] : memref<32x128xf32, #tpu.memory_space<vmem>>, vector<32x8xf32>
    tpu.vector_store %arg8[%c0_11, %c48], %18 {strides = array<i32>} : memref<32x128xf32, #tpu.memory_space<vmem>>, vector<32x8xf32>,
    %20 = vector.extract_strided_slice %5 {offsets = [224, 0], sizes = [32, 8], strides = [1, 1]} : vector<512x8xf32> to vector<32x8xf32>
    %c0_12 = arith.constant 0 : index
    %c56 = arith.constant 56 : index
    %21 = vector.load %arg8[%c0_12, %c56] : memref<32x128xf32, #tpu.memory_space<vmem>>, vector<32x8xf32>
    tpu.vector_store %arg8[%c0_12, %c56], %20 {strides = array<i32>} : memref<32x128xf32, #tpu.memory_space<vmem>>, vector<32x8xf32>,
    %22 = vector.extract_strided_slice %5 {offsets = [256, 0], sizes = [32, 8], strides = [1, 1]} : vector<512x8xf32> to vector<32x8xf32>
    %c0_13 = arith.constant 0 : index
    %c64 = arith.constant 64 : index
    %23 = vector.load %arg8[%c0_13, %c64] : memref<32x128xf32, #tpu.memory_space<vmem>>, vector<32x8xf32>
    tpu.vector_store %arg8[%c0_13, %c64], %22 {strides = array<i32>} : memref<32x128xf32, #tpu.memory_space<vmem>>, vector<32x8xf32>,
    %24 = vector.extract_strided_slice %5 {offsets = [288, 0], sizes = [32, 8], strides = [1, 1]} : vector<512x8xf32> to vector<32x8xf32>
    %c0_14 = arith.constant 0 : index
    %c72 = arith.constant 72 : index
    %25 = vector.load %arg8[%c0_14, %c72] : memref<32x128xf32, #tpu.memory_space<vmem>>, vector<32x8xf32>
    tpu.vector_store %arg8[%c0_14, %c72], %24 {strides = array<i32>} : memref<32x128xf32, #tpu.memory_space<vmem>>, vector<32x8xf32>,
    %26 = vector.extract_strided_slice %5 {offsets = [320, 0], sizes = [32, 8], strides = [1, 1]} : vector<512x8xf32> to vector<32x8xf32>
    %c0_15 = arith.constant 0 : index
    %c80 = arith.constant 80 : index
    %27 = vector.load %arg8[%c0_15, %c80] : memref<32x128xf32, #tpu.memory_space<vmem>>, vector<32x8xf32>
    tpu.vector_store %arg8[%c0_15, %c80], %26 {strides = array<i32>} : memref<32x128xf32, #tpu.memory_space<vmem>>, vector<32x8xf32>,
    %28 = vector.extract_strided_slice %5 {offsets = [352, 0], sizes = [32, 8], strides = [1, 1]} : vector<512x8xf32> to vector<32x8xf32>
    %c0_16 = arith.constant 0 : index
    %c88 = arith.constant 88 : index
    %29 = vector.load %arg8[%c0_16, %c88] : memref<32x128xf32, #tpu.memory_space<vmem>>, vector<32x8xf32>
    tpu.vector_store %arg8[%c0_16, %c88], %28 {strides = array<i32>} : memref<32x128xf32, #tpu.memory_space<vmem>>, vector<32x8xf32>,
    %30 = vector.extract_strided_slice %5 {offsets = [384, 0], sizes = [32, 8], strides = [1, 1]} : vector<512x8xf32> to vector<32x8xf32>
    %c0_17 = arith.constant 0 : index
    %c96 = arith.constant 96 : index
    %31 = vector.load %arg8[%c0_17, %c96] : memref<32x128xf32, #tpu.memory_space<vmem>>, vector<32x8xf32>
    tpu.vector_store %arg8[%c0_17, %c96], %30 {strides = array<i32>} : memref<32x128xf32, #tpu.memory_space<vmem>>, vector<32x8xf32>,
    %32 = vector.extract_strided_slice %5 {offsets = [416, 0], sizes = [32, 8], strides = [1, 1]} : vector<512x8xf32> to vector<32x8xf32>
    %c0_18 = arith.constant 0 : index
    %c104 = arith.constant 104 : index
    %33 = vector.load %arg8[%c0_18, %c104] : memref<32x128xf32, #tpu.memory_space<vmem>>, vector<32x8xf32>
    tpu.vector_store %arg8[%c0_18, %c104], %32 {strides = array<i32>} : memref<32x128xf32, #tpu.memory_space<vmem>>, vector<32x8xf32>,
    %34 = vector.extract_strided_slice %5 {offsets = [448, 0], sizes = [32, 8], strides = [1, 1]} : vector<512x8xf32> to vector<32x8xf32>
    %c0_19 = arith.constant 0 : index
    %c112 = arith.constant 112 : index
    %35 = vector.load %arg8[%c0_19, %c112] : memref<32x128xf32, #tpu.memory_space<vmem>>, vector<32x8xf32>
    tpu.vector_store %arg8[%c0_19, %c112], %34 {strides = array<i32>} : memref<32x128xf32, #tpu.memory_space<vmem>>, vector<32x8xf32>,
    %36 = vector.extract_strided_slice %5 {offsets = [480, 0], sizes = [32, 8], strides = [1, 1]} : vector<512x8xf32> to vector<32x8xf32>
    %c0_20 = arith.constant 0 : index
    %c120 = arith.constant 120 : index
    %37 = vector.load %arg8[%c0_20, %c120] : memref<32x128xf32, #tpu.memory_space<vmem>>, vector<32x8xf32>
    tpu.vector_store %arg8[%c0_20, %c120], %36 {strides = array<i32>} : memref<32x128xf32, #tpu.memory_space<vmem>>, vector<32x8xf32>,
    %c0_21 = arith.constant 0 : index
    %c0_22 = arith.constant 0 : index
    %38 = vector.load %arg8[%c0_21, %c0_22] : memref<32x128xf32, #tpu.memory_space<vmem>>, vector<32x128xf32>
    %c0_23 = arith.constant 0 : index
    %c0_24 = arith.constant 0 : index
    %39 = vector.load %arg2[%c0_23, %c0_24] : memref<128x16xf32, #tpu.memory_space<vmem>>, vector<128x16xf32>
    %cst_25 = arith.constant dense<0.000000e+00> : vector<32x16xf32>
    %40 = tpu.matmul %38, %39, %cst_25 {dimension_numbers = #tpu.dot_dimension_numbers<[1], [0], [0], [1], [0, 0, 1, 1], [], []>} : vector<32x128xf32>, vector<128x16xf32>, vector<32x16xf32> -> vector<32x16xf32>
    %cst_26 = arith.constant dense<0.000000e+00> : vector<16xf32>
    %41 = vector.multi_reduction <add>, %40, %cst_26 [0] : vector<32x16xf32> to vector<16xf32>
    %42 = vector.shape_cast %41 : vector<16xf32> to vector<1x16xf32>
    %cst_27 = arith.constant 3.125000e-02 : f32
    %43 = vector.broadcast %cst_27 : f32 to vector<1x16xf32>
    %44 = arith.mulf %42, %43 : vector<1x16xf32>
    %45 = vector.broadcast %44 : vector<1x16xf32> to vector<32x16xf32>
    %46 = arith.subf %40, %45 : vector<32x16xf32>
    %47 = arith.mulf %46, %46 : vector<32x16xf32>
    %cst_28 = arith.constant dense<0.000000e+00> : vector<16xf32>
    %48 = vector.multi_reduction <add>, %47, %cst_28 [0] : vector<32x16xf32> to vector<16xf32>
    %49 = vector.shape_cast %48 : vector<16xf32> to vector<1x16xf32>
    %cst_29 = arith.constant 3.125000e-02 : f32
    %50 = vector.broadcast %cst_29 : f32 to vector<1x16xf32>
    %51 = arith.mulf %49, %50 : vector<1x16xf32>
    %cst_30 = arith.constant 9.99999974E-6 : f32
    %52 = vector.broadcast %cst_30 : f32 to vector<1x16xf32>
    %53 = arith.addf %51, %52 : vector<1x16xf32>
    %54 = math.rsqrt %53 : vector<1x16xf32>
    %55 = vector.broadcast %54 : vector<1x16xf32> to vector<32x16xf32>
    %56 = arith.mulf %46, %55 : vector<32x16xf32>
    %c0_31 = arith.constant 0 : index
    %c0_32 = arith.constant 0 : index
    %57 = vector.load %arg3[%c0_31, %c0_32] : memref<1x16xf32, #tpu.memory_space<vmem>>, vector<1x16xf32>
    %58 = vector.broadcast %57 : vector<1x16xf32> to vector<32x16xf32>
    %59 = arith.mulf %56, %58 : vector<32x16xf32>
    %c0_33 = arith.constant 0 : index
    %c0_34 = arith.constant 0 : index
    %60 = vector.load %arg4[%c0_33, %c0_34] : memref<1x16xf32, #tpu.memory_space<vmem>>, vector<1x16xf32>
    %61 = vector.broadcast %60 : vector<1x16xf32> to vector<32x16xf32>
    %62 = arith.addf %59, %61 : vector<32x16xf32>
    %cst_35 = arith.constant 2.000000e-01 : f32
    %63 = vector.broadcast %cst_35 : f32 to vector<32x16xf32>
    %64 = arith.mulf %63, %62 : vector<32x16xf32>
    %65 = arith.maximumf %62, %64 : vector<32x16xf32>
    %cst_36 = arith.constant 0.000000e+00 : f32
    %66 = vector.broadcast %cst_36 : f32 to vector<8x256xf32>
    %c0_37 = arith.constant 0 : index
    %c0_38 = arith.constant 0 : index
    %67 = vector.load %arg9[%c0_37, %c0_38] : memref<8x256xf32, #tpu.memory_space<vmem>>, vector<8x256xf32>
    tpu.vector_store %arg9[%c0_37, %c0_38], %66 {strides = array<i32>} : memref<8x256xf32, #tpu.memory_space<vmem>>, vector<8x256xf32>,
    %68 = vector.extract_strided_slice %65 {offsets = [0, 0], sizes = [2, 16], strides = [1, 1]} : vector<32x16xf32> to vector<2x16xf32>
    %c0_39 = arith.constant 0 : index
    %c0_40 = arith.constant 0 : index
    %69 = vector.load %arg9[%c0_39, %c0_40] : memref<8x256xf32, #tpu.memory_space<vmem>>, vector<2x16xf32>
    tpu.vector_store %arg9[%c0_39, %c0_40], %68 {strides = array<i32>} : memref<8x256xf32, #tpu.memory_space<vmem>>, vector<2x16xf32>,
    %70 = vector.extract_strided_slice %65 {offsets = [2, 0], sizes = [2, 16], strides = [1, 1]} : vector<32x16xf32> to vector<2x16xf32>
    %c0_41 = arith.constant 0 : index
    %c16_42 = arith.constant 16 : index
    %71 = vector.load %arg9[%c0_41, %c16_42] : memref<8x256xf32, #tpu.memory_space<vmem>>, vector<2x16xf32>
    tpu.vector_store %arg9[%c0_41, %c16_42], %70 {strides = array<i32>} : memref<8x256xf32, #tpu.memory_space<vmem>>, vector<2x16xf32>,
    %72 = vector.extract_strided_slice %65 {offsets = [4, 0], sizes = [2, 16], strides = [1, 1]} : vector<32x16xf32> to vector<2x16xf32>
    %c0_43 = arith.constant 0 : index
    %c32_44 = arith.constant 32 : index
    %73 = vector.load %arg9[%c0_43, %c32_44] : memref<8x256xf32, #tpu.memory_space<vmem>>, vector<2x16xf32>
    tpu.vector_store %arg9[%c0_43, %c32_44], %72 {strides = array<i32>} : memref<8x256xf32, #tpu.memory_space<vmem>>, vector<2x16xf32>,
    %74 = vector.extract_strided_slice %65 {offsets = [6, 0], sizes = [2, 16], strides = [1, 1]} : vector<32x16xf32> to vector<2x16xf32>
    %c0_45 = arith.constant 0 : index
    %c48_46 = arith.constant 48 : index
    %75 = vector.load %arg9[%c0_45, %c48_46] : memref<8x256xf32, #tpu.memory_space<vmem>>, vector<2x16xf32>
    tpu.vector_store %arg9[%c0_45, %c48_46], %74 {strides = array<i32>} : memref<8x256xf32, #tpu.memory_space<vmem>>, vector<2x16xf32>,
    %76 = vector.extract_strided_slice %65 {offsets = [8, 0], sizes = [2, 16], strides = [1, 1]} : vector<32x16xf32> to vector<2x16xf32>
    %c0_47 = arith.constant 0 : index
    %c64_48 = arith.constant 64 : index
    %77 = vector.load %arg9[%c0_47, %c64_48] : memref<8x256xf32, #tpu.memory_space<vmem>>, vector<2x16xf32>
    tpu.vector_store %arg9[%c0_47, %c64_48], %76 {strides = array<i32>} : memref<8x256xf32, #tpu.memory_space<vmem>>, vector<2x16xf32>,
    %78 = vector.extract_strided_slice %65 {offsets = [10, 0], sizes = [2, 16], strides = [1, 1]} : vector<32x16xf32> to vector<2x16xf32>
    %c0_49 = arith.constant 0 : index
    %c80_50 = arith.constant 80 : index
    %79 = vector.load %arg9[%c0_49, %c80_50] : memref<8x256xf32, #tpu.memory_space<vmem>>, vector<2x16xf32>
    tpu.vector_store %arg9[%c0_49, %c80_50], %78 {strides = array<i32>} : memref<8x256xf32, #tpu.memory_space<vmem>>, vector<2x16xf32>,
    %80 = vector.extract_strided_slice %65 {offsets = [12, 0], sizes = [2, 16], strides = [1, 1]} : vector<32x16xf32> to vector<2x16xf32>
    %c0_51 = arith.constant 0 : index
    %c96_52 = arith.constant 96 : index
    %81 = vector.load %arg9[%c0_51, %c96_52] : memref<8x256xf32, #tpu.memory_space<vmem>>, vector<2x16xf32>
    tpu.vector_store %arg9[%c0_51, %c96_52], %80 {strides = array<i32>} : memref<8x256xf32, #tpu.memory_space<vmem>>, vector<2x16xf32>,
    %82 = vector.extract_strided_slice %65 {offsets = [14, 0], sizes = [2, 16], strides = [1, 1]} : vector<32x16xf32> to vector<2x16xf32>
    %c0_53 = arith.constant 0 : index
    %c112_54 = arith.constant 112 : index
    %83 = vector.load %arg9[%c0_53, %c112_54] : memref<8x256xf32, #tpu.memory_space<vmem>>, vector<2x16xf32>
    tpu.vector_store %arg9[%c0_53, %c112_54], %82 {strides = array<i32>} : memref<8x256xf32, #tpu.memory_space<vmem>>, vector<2x16xf32>,
    %84 = vector.extract_strided_slice %65 {offsets = [16, 0], sizes = [2, 16], strides = [1, 1]} : vector<32x16xf32> to vector<2x16xf32>
    %c0_55 = arith.constant 0 : index
    %c128 = arith.constant 128 : index
    %85 = vector.load %arg9[%c0_55, %c128] : memref<8x256xf32, #tpu.memory_space<vmem>>, vector<2x16xf32>
    tpu.vector_store %arg9[%c0_55, %c128], %84 {strides = array<i32>} : memref<8x256xf32, #tpu.memory_space<vmem>>, vector<2x16xf32>,
    %86 = vector.extract_strided_slice %65 {offsets = [18, 0], sizes = [2, 16], strides = [1, 1]} : vector<32x16xf32> to vector<2x16xf32>
    %c0_56 = arith.constant 0 : index
    %c144 = arith.constant 144 : index
    %87 = vector.load %arg9[%c0_56, %c144] : memref<8x256xf32, #tpu.memory_space<vmem>>, vector<2x16xf32>
    tpu.vector_store %arg9[%c0_56, %c144], %86 {strides = array<i32>} : memref<8x256xf32, #tpu.memory_space<vmem>>, vector<2x16xf32>,
    %88 = vector.extract_strided_slice %65 {offsets = [20, 0], sizes = [2, 16], strides = [1, 1]} : vector<32x16xf32> to vector<2x16xf32>
    %c0_57 = arith.constant 0 : index
    %c160 = arith.constant 160 : index
    %89 = vector.load %arg9[%c0_57, %c160] : memref<8x256xf32, #tpu.memory_space<vmem>>, vector<2x16xf32>
    tpu.vector_store %arg9[%c0_57, %c160], %88 {strides = array<i32>} : memref<8x256xf32, #tpu.memory_space<vmem>>, vector<2x16xf32>,
    %90 = vector.extract_strided_slice %65 {offsets = [22, 0], sizes = [2, 16], strides = [1, 1]} : vector<32x16xf32> to vector<2x16xf32>
    %c0_58 = arith.constant 0 : index
    %c176 = arith.constant 176 : index
    %91 = vector.load %arg9[%c0_58, %c176] : memref<8x256xf32, #tpu.memory_space<vmem>>, vector<2x16xf32>
    tpu.vector_store %arg9[%c0_58, %c176], %90 {strides = array<i32>} : memref<8x256xf32, #tpu.memory_space<vmem>>, vector<2x16xf32>,
    %92 = vector.extract_strided_slice %65 {offsets = [24, 0], sizes = [2, 16], strides = [1, 1]} : vector<32x16xf32> to vector<2x16xf32>
    %c0_59 = arith.constant 0 : index
    %c192 = arith.constant 192 : index
    %93 = vector.load %arg9[%c0_59, %c192] : memref<8x256xf32, #tpu.memory_space<vmem>>, vector<2x16xf32>
    tpu.vector_store %arg9[%c0_59, %c192], %92 {strides = array<i32>} : memref<8x256xf32, #tpu.memory_space<vmem>>, vector<2x16xf32>,
    %94 = vector.extract_strided_slice %65 {offsets = [26, 0], sizes = [2, 16], strides = [1, 1]} : vector<32x16xf32> to vector<2x16xf32>
    %c0_60 = arith.constant 0 : index
    %c208 = arith.constant 208 : index
    %95 = vector.load %arg9[%c0_60, %c208] : memref<8x256xf32, #tpu.memory_space<vmem>>, vector<2x16xf32>
    tpu.vector_store %arg9[%c0_60, %c208], %94 {strides = array<i32>} : memref<8x256xf32, #tpu.memory_space<vmem>>, vector<2x16xf32>,
    %96 = vector.extract_strided_slice %65 {offsets = [28, 0], sizes = [2, 16], strides = [1, 1]} : vector<32x16xf32> to vector<2x16xf32>
    %c0_61 = arith.constant 0 : index
    %c224 = arith.constant 224 : index
    %97 = vector.load %arg9[%c0_61, %c224] : memref<8x256xf32, #tpu.memory_space<vmem>>, vector<2x16xf32>
    tpu.vector_store %arg9[%c0_61, %c224], %96 {strides = array<i32>} : memref<8x256xf32, #tpu.memory_space<vmem>>, vector<2x16xf32>,
    %98 = vector.extract_strided_slice %65 {offsets = [30, 0], sizes = [2, 16], strides = [1, 1]} : vector<32x16xf32> to vector<2x16xf32>
    %c0_62 = arith.constant 0 : index
    %c240 = arith.constant 240 : index
    %99 = vector.load %arg9[%c0_62, %c240] : memref<8x256xf32, #tpu.memory_space<vmem>>, vector<2x16xf32>
    tpu.vector_store %arg9[%c0_62, %c240], %98 {strides = array<i32>} : memref<8x256xf32, #tpu.memory_space<vmem>>, vector<2x16xf32>,
    %c0_63 = arith.constant 0 : index
    %c0_64 = arith.constant 0 : index
    %100 = vector.load %arg9[%c0_63, %c0_64] : memref<8x256xf32, #tpu.memory_space<vmem>>, vector<8x256xf32>
    %c0_65 = arith.constant 0 : index
    %c0_66 = arith.constant 0 : index
    %101 = vector.load %arg5[%c0_65, %c0_66] : memref<256x128xf32, #tpu.memory_space<vmem>>, vector<256x128xf32>
    %cst_67 = arith.constant dense<0.000000e+00> : vector<8x128xf32>
    %102 = tpu.matmul %100, %101, %cst_67 {dimension_numbers = #tpu.dot_dimension_numbers<[1], [0], [0], [1], [0, 0, 1, 1], [], []>} : vector<8x256xf32>, vector<256x128xf32>, vector<8x128xf32> -> vector<8x128xf32>
    %c0_68 = arith.constant 0 : index
    %c0_69 = arith.constant 0 : index
    %103 = vector.load %arg6[%c0_68, %c0_69] : memref<1x128xf32, #tpu.memory_space<vmem>>, vector<1x128xf32>
    %104 = vector.broadcast %103 : vector<1x128xf32> to vector<8x128xf32>
    %105 = arith.addf %102, %104 : vector<8x128xf32>
    %c0_70 = arith.constant 0 : index
    %c0_71 = arith.constant 0 : index
    %106 = vector.load %arg7[%c0_70, %c0_71] : memref<8x128xf32, #tpu.memory_space<vmem>>, vector<8x128xf32>
    tpu.vector_store %arg7[%c0_70, %c0_71], %105 {strides = array<i32>} : memref<8x128xf32, #tpu.memory_space<vmem>>, vector<8x128xf32>,
    return
  }
}

</mosaic_0001>

<llo_original>
// kernel: encoder_forward.1
$region0: #{encoder_forward.1}
  #allocation0 [shape = 'u32[]', space=smem, size = 0x4, offset = 0x4, fixed_abs, tag = 'smem constant byte address 0x4 - core index']
  #allocation1 [shape = 'u32[72,128]{1,0:T(1,128)}', space=vmem, size = 0x9000, scoped, tag = 'internal scratch']
  #allocation2 [shape = 'f32[32,128]{1,0:T(8,128)}', space=vmem, size = 0x4000, scoped, tag = 'scratch operand']
  #allocation3 [shape = 'f32[8,256]{1,0:T(8,128)}', space=vmem, size = 0x2000, scoped, tag = 'scratch operand']
  %s0 = inlined_call_operand.vmem [shape: f32[512,48], index: 0, kind: input, shape index: {}]
  %s1 = inlined_call_operand.vmem [shape: f32[48,8], index: 1, kind: input, shape index: {}]
  %s2 = inlined_call_operand.vmem [shape: f32[128,16], index: 2, kind: input, shape index: {}]
  %s3 = inlined_call_operand.vmem [shape: f32[1,16], index: 3, kind: input, shape index: {}]
  %s4 = inlined_call_operand.vmem [shape: f32[1,16], index: 4, kind: input, shape index: {}]
  %s5 = inlined_call_operand.vmem [shape: f32[256,128], index: 5, kind: input, shape index: {}]
  %s6 = inlined_call_operand.vmem [shape: f32[1,128], index: 6, kind: input, shape index: {}]
  %s7 = inlined_call_operand.vmem [shape: f32[8,128], index: 7, kind: output, shape index: {}]
  %s8 = sld [smem:[#allocation0]]
  $region38: #{encoder_forward.1} parent=0
    _
  %s10 = ssub.s32 1, %s8
  %s11 = scalar_select 0, %s10, %s8
  // Predicated region
  $region2: #{encoder_forward.1} parent=0 // pred_check
    _
  $region3: #{encoder_forward.1} parent=0 // pred_check_branch
    %13 = sbr.rel (0) target = $region5
  $region4: #{encoder_forward.1} parent=0 // pred_region
    _
  $region5: #{encoder_forward.1} parent=0 // pred_fallthru
    _
  // Predicated region
  $region6: #{encoder_forward.1} parent=0 // pred_check
    _
  $region7: #{encoder_forward.1} parent=0 // pred_check_branch
    %15 = sbr.rel (0) target = $region9
  $region8: #{encoder_forward.1} parent=0 // pred_region
    _
  $region9: #{encoder_forward.1} parent=0 // pred_fallthru
    _
  // Predicated region
  $region10: #{encoder_forward.1} parent=0 // pred_check
    _
  $region11: #{encoder_forward.1} parent=0 // pred_check_branch
    %17 = sbr.rel (0) target = $region13
  $region12: #{encoder_forward.1} parent=0 // pred_region
    _
  $region13: #{encoder_forward.1} parent=0 // pred_fallthru
    _
  // Predicated region
  $region14: #{encoder_forward.1} parent=0 // pred_check
    _
  $region15: #{encoder_forward.1} parent=0 // pred_check_branch
    %19 = sbr.rel (0) target = $region17
  $region16: #{encoder_forward.1} parent=0 // pred_region
    _
  $region17: #{encoder_forward.1} parent=0 // pred_fallthru
    _
  // Predicated region
  $region18: #{encoder_forward.1} parent=0 // pred_check
    _
  $region19: #{encoder_forward.1} parent=0 // pred_check_branch
    %21 = sbr.rel (0) target = $region21
  $region20: #{encoder_forward.1} parent=0 // pred_region
    _
  $region21: #{encoder_forward.1} parent=0 // pred_fallthru
    _
  // Predicated region
  $region22: #{encoder_forward.1} parent=0 // pred_check
    _
  $region23: #{encoder_forward.1} parent=0 // pred_check_branch
    %23 = sbr.rel (0) target = $region25
  $region24: #{encoder_forward.1} parent=0 // pred_region
    _
  $region25: #{encoder_forward.1} parent=0 // pred_fallthru
    _
  // Predicated region
  $region26: #{encoder_forward.1} parent=0 // pred_check
    _
  $region27: #{encoder_forward.1} parent=0 // pred_check_branch
    %25 = sbr.rel (0) target = $region29
  $region28: #{encoder_forward.1} parent=0 // pred_region
    _
  $region29: #{encoder_forward.1} parent=0 // pred_fallthru
    _
  %v26 = vld [vmem:[%s0] sm:$0xff]
  %v27 = vld [vmem:[%s0 + $0x8] sm:$0xff]
  %v28 = vld [vmem:[%s0 + $0x10] sm:$0xff]
  %v29 = vld [vmem:[%s0 + $0x18] sm:$0xff]
  %v30 = vld [vmem:[%s0 + $0x20] sm:$0xff]
  %v31 = vld [vmem:[%s0 + $0x28] sm:$0xff]
  %v32 = vld [vmem:[%s0 + $0x30] sm:$0xff]
  %v33 = vld [vmem:[%s0 + $0x38] sm:$0xff]
  %v34 = vld [vmem:[%s0 + $0x40] sm:$0xff]
  %v35 = vld [vmem:[%s0 + $0x48] sm:$0xff]
  %v36 = vld [vmem:[%s0 + $0x50] sm:$0xff]
  %v37 = vld [vmem:[%s0 + $0x58] sm:$0xff]
  %v38 = vld [vmem:[%s0 + $0x60] sm:$0xff]
  %v39 = vld [vmem:[%s0 + $0x68] sm:$0xff]
  %v40 = vld [vmem:[%s0 + $0x70] sm:$0xff]
  %v41 = vld [vmem:[%s0 + $0x78] sm:$0xff]
  %v42 = vld [vmem:[%s0 + $0x80] sm:$0xff]
  %v43 = vld [vmem:[%s0 + $0x88] sm:$0xff]
  %v44 = vld [vmem:[%s0 + $0x90] sm:$0xff]
  %v45 = vld [vmem:[%s0 + $0x98] sm:$0xff]
  %v46 = vld [vmem:[%s0 + $0xa0] sm:$0xff]
  %v47 = vld [vmem:[%s0 + $0xa8] sm:$0xff]
  %v48 = vld [vmem:[%s0 + $0xb0] sm:$0xff]
  %v49 = vld [vmem:[%s0 + $0xb8] sm:$0xff]
  %v50 = vld [vmem:[%s0 + $0xc0] sm:$0xff]
  %v51 = vld [vmem:[%s0 + $0xc8] sm:$0xff]
  %v52 = vld [vmem:[%s0 + $0xd0] sm:$0xff]
  %v53 = vld [vmem:[%s0 + $0xd8] sm:$0xff]
  %v54 = vld [vmem:[%s0 + $0xe0] sm:$0xff]
  %v55 = vld [vmem:[%s0 + $0xe8] sm:$0xff]
  %v56 = vld [vmem:[%s0 + $0xf0] sm:$0xff]
  %v57 = vld [vmem:[%s0 + $0xf8] sm:$0xff]
  %v58 = vld [vmem:[%s0 + $0x100] sm:$0xff]
  %v59 = vld [vmem:[%s0 + $0x108] sm:$0xff]
  %v60 = vld [vmem:[%s0 + $0x110] sm:$0xff]
  %v61 = vld [vmem:[%s0 + $0x118] sm:$0xff]
  %v62 = vld [vmem:[%s0 + $0x120] sm:$0xff]
  %v63 = vld [vmem:[%s0 + $0x128] sm:$0xff]
  %v64 = vld [vmem:[%s0 + $0x130] sm:$0xff]
  %v65 = vld [vmem:[%s0 + $0x138] sm:$0xff]
  %v66 = vld [vmem:[%s0 + $0x140] sm:$0xff]
  %v67 = vld [vmem:[%s0 + $0x148] sm:$0xff]
  %v68 = vld [vmem:[%s0 + $0x150] sm:$0xff]
  %v69 = vld [vmem:[%s0 + $0x158] sm:$0xff]
  %v70 = vld [vmem:[%s0 + $0x160] sm:$0xff]
  %v71 = vld [vmem:[%s0 + $0x168] sm:$0xff]
  %v72 = vld [vmem:[%s0 + $0x170] sm:$0xff]
  %v73 = vld [vmem:[%s0 + $0x178] sm:$0xff]
  %v74 = vld [vmem:[%s0 + $0x180] sm:$0xff]
  %v75 = vld [vmem:[%s0 + $0x188] sm:$0xff]
  %v76 = vld [vmem:[%s0 + $0x190] sm:$0xff]
  %v77 = vld [vmem:[%s0 + $0x198] sm:$0xff]
  %v78 = vld [vmem:[%s0 + $0x1a0] sm:$0xff]
  %v79 = vld [vmem:[%s0 + $0x1a8] sm:$0xff]
  %v80 = vld [vmem:[%s0 + $0x1b0] sm:$0xff]
  %v81 = vld [vmem:[%s0 + $0x1b8] sm:$0xff]
  %v82 = vld [vmem:[%s0 + $0x1c0] sm:$0xff]
  %v83 = vld [vmem:[%s0 + $0x1c8] sm:$0xff]
  %v84 = vld [vmem:[%s0 + $0x1d0] sm:$0xff]
  %v85 = vld [vmem:[%s0 + $0x1d8] sm:$0xff]
  %v86 = vld [vmem:[%s0 + $0x1e0] sm:$0xff]
  %v87 = vld [vmem:[%s0 + $0x1e8] sm:$0xff]
  %v88 = vld [vmem:[%s0 + $0x1f0] sm:$0xff]
  %v89 = vld [vmem:[%s0 + $0x1f8] sm:$0xff]
  %v90 = vld [vmem:[%s1] sm:$0xff]
  %v91 = vld [vmem:[%s1 + $0x8] sm:$0xff]
  %v92 = vld [vmem:[%s1 + $0x10] sm:$0xff]
  %v93 = vld [vmem:[%s1 + $0x18] sm:$0xff]
  %v94 = vld [vmem:[%s1 + $0x20] sm:$0xff]
  %v95 = vld [vmem:[%s1 + $0x28] sm:$0xff]
  %vm96 = vcmask 392192
  %v98 = vsel %vm96, %v26, 0
  %v101 = vsel %vm96, %v27, 0
  %v104 = vsel %vm96, %v28, 0
  %v107 = vsel %vm96, %v29, 0
  %v110 = vsel %vm96, %v30, 0
  %v113 = vsel %vm96, %v31, 0
  %v116 = vsel %vm96, %v32, 0
  %v119 = vsel %vm96, %v33, 0
  %v122 = vsel %vm96, %v34, 0
  %v125 = vsel %vm96, %v35, 0
  %v128 = vsel %vm96, %v36, 0
  %v131 = vsel %vm96, %v37, 0
  %v134 = vsel %vm96, %v38, 0
  %v137 = vsel %vm96, %v39, 0
  %v140 = vsel %vm96, %v40, 0
  %v143 = vsel %vm96, %v41, 0
  %v146 = vsel %vm96, %v42, 0
  %v149 = vsel %vm96, %v43, 0
  %v152 = vsel %vm96, %v44, 0
  %v155 = vsel %vm96, %v45, 0
  %v158 = vsel %vm96, %v46, 0
  %v161 = vsel %vm96, %v47, 0
  %v164 = vsel %vm96, %v48, 0
  %v167 = vsel %vm96, %v49, 0
  %v170 = vsel %vm96, %v50, 0
  %v173 = vsel %vm96, %v51, 0
  %v176 = vsel %vm96, %v52, 0
  %v179 = vsel %vm96, %v53, 0
  %v182 = vsel %vm96, %v54, 0
  %v185 = vsel %vm96, %v55, 0
  %v188 = vsel %vm96, %v56, 0
  %v191 = vsel %vm96, %v57, 0
  %v194 = vsel %vm96, %v58, 0
  %v197 = vsel %vm96, %v59, 0
  %v200 = vsel %vm96, %v60, 0
  %v203 = vsel %vm96, %v61, 0
  %v206 = vsel %vm96, %v62, 0
  %v209 = vsel %vm96, %v63, 0
  %v212 = vsel %vm96, %v64, 0
  %v215 = vsel %vm96, %v65, 0
  %v218 = vsel %vm96, %v66, 0
  %v221 = vsel %vm96, %v67, 0
  %v224 = vsel %vm96, %v68, 0
  %v227 = vsel %vm96, %v69, 0
  %v230 = vsel %vm96, %v70, 0
  %v233 = vsel %vm96, %v71, 0
  %v236 = vsel %vm96, %v72, 0
  %v239 = vsel %vm96, %v73, 0
  %v242 = vsel %vm96, %v74, 0
  %v245 = vsel %vm96, %v75, 0
  %v248 = vsel %vm96, %v76, 0
  %v251 = vsel %vm96, %v77, 0
  %v254 = vsel %vm96, %v78, 0
  %v257 = vsel %vm96, %v79, 0
  %v260 = vsel %vm96, %v80, 0
  %v263 = vsel %vm96, %v81, 0
  %v266 = vsel %vm96, %v82, 0
  %v269 = vsel %vm96, %v83, 0
  %v272 = vsel %vm96, %v84, 0
  %v275 = vsel %vm96, %v85, 0
  %v278 = vsel %vm96, %v86, 0
  %v281 = vsel %vm96, %v87, 0
  %v284 = vsel %vm96, %v88, 0
  %v287 = vsel %vm96, %v89, 0
  %289 = vmatpush.msra.mxu0 0.0
  %290 = vmatpush.msra.mxu0 0.0
  %291 = vmatpush.msra.mxu0 0.0
  %292 = vmatpush.msra.mxu0 0.0
  %293 = vmatpush.msra.mxu0 0.0
  %294 = vmatpush.msra.mxu0 0.0
  %295 = vmatpush.msra.mxu0 0.0
  %296 = vmatpush.msra.mxu0 0.0
  %297 = vmatpush.msra.mxu0 0.0
  %298 = vmatpush.msra.mxu0 0.0
  %299 = vmatpush.msra.mxu0 %v95
  %300 = vmatpush.msra.mxu0 %v94
  %301 = vmatpush.msra.mxu0 %v93
  %302 = vmatpush.msra.mxu0 %v92
  %303 = vmatpush.msra.mxu0 %v91
  %304 = vmatpush.msra.mxu0 %v90
  %305 = vmatmul.f32.gmra.mxu0 %v98
  %v306 = vpop.f32.mrf.mxu0
  %v307 = vadd.f32 0.0, %v306
  %308 = vmatmul.f32.gmra.mxu0 %v101
  %v309 = vpop.f32.mrf.mxu0
  %v310 = vadd.f32 0.0, %v309
  %311 = vmatmul.f32.gmra.mxu0 %v104
  %v312 = vpop.f32.mrf.mxu0
  %v313 = vadd.f32 0.0, %v312
  %314 = vmatmul.f32.gmra.mxu0 %v107
  %v315 = vpop.f32.mrf.mxu0
  %v316 = vadd.f32 0.0, %v315
  %317 = vmatmul.f32.gmra.mxu0 %v110
  %v318 = vpop.f32.mrf.mxu0
  %v319 = vadd.f32 0.0, %v318
  %320 = vmatmul.f32.gmra.mxu0 %v113
  %v321 = vpop.f32.mrf.mxu0
  %v322 = vadd.f32 0.0, %v321
  %323 = vmatmul.f32.gmra.mxu0 %v116
  %v324 = vpop.f32.mrf.mxu0
  %v325 = vadd.f32 0.0, %v324
  %326 = vmatmul.f32.gmra.mxu0 %v119
  %v327 = vpop.f32.mrf.mxu0
  %v328 = vadd.f32 0.0, %v327
  %329 = vmatmul.f32.gmra.mxu0 %v122
  %v330 = vpop.f32.mrf.mxu0
  %v331 = vadd.f32 0.0, %v330
  %332 = vmatmul.f32.gmra.mxu0 %v125
  %v333 = vpop.f32.mrf.mxu0
  %v334 = vadd.f32 0.0, %v333
  %335 = vmatmul.f32.gmra.mxu0 %v128
  %v336 = vpop.f32.mrf.mxu0
  %v337 = vadd.f32 0.0, %v336
  %338 = vmatmul.f32.gmra.mxu0 %v131
  %v339 = vpop.f32.mrf.mxu0
  %v340 = vadd.f32 0.0, %v339
  %341 = vmatmul.f32.gmra.mxu0 %v134
  %v342 = vpop.f32.mrf.mxu0
  %v343 = vadd.f32 0.0, %v342
  %344 = vmatmul.f32.gmra.mxu0 %v137
  %v345 = vpop.f32.mrf.mxu0
  %v346 = vadd.f32 0.0, %v345
  %347 = vmatmul.f32.gmra.mxu0 %v140
  %v348 = vpop.f32.mrf.mxu0
  %v349 = vadd.f32 0.0, %v348
  %350 = vmatmul.f32.gmra.mxu0 %v143
  %v351 = vpop.f32.mrf.mxu0
  %v352 = vadd.f32 0.0, %v351
  %353 = vmatmul.f32.gmra.mxu0 %v146
  %v354 = vpop.f32.mrf.mxu0
  %v355 = vadd.f32 0.0, %v354
  %356 = vmatmul.f32.gmra.mxu0 %v149
  %v357 = vpop.f32.mrf.mxu0
  %v358 = vadd.f32 0.0, %v357
  %359 = vmatmul.f32.gmra.mxu0 %v152
  %v360 = vpop.f32.mrf.mxu0
  %v361 = vadd.f32 0.0, %v360
  %362 = vmatmul.f32.gmra.mxu0 %v155
  %v363 = vpop.f32.mrf.mxu0
  %v364 = vadd.f32 0.0, %v363
  %365 = vmatmul.f32.gmra.mxu0 %v158
  %v366 = vpop.f32.mrf.mxu0
  %v367 = vadd.f32 0.0, %v366
  %368 = vmatmul.f32.gmra.mxu0 %v161
  %v369 = vpop.f32.mrf.mxu0
  %v370 = vadd.f32 0.0, %v369
  %371 = vmatmul.f32.gmra.mxu0 %v164
  %v372 = vpop.f32.mrf.mxu0
  %v373 = vadd.f32 0.0, %v372
  %374 = vmatmul.f32.gmra.mxu0 %v167
  %v375 = vpop.f32.mrf.mxu0
  %v376 = vadd.f32 0.0, %v375
  %377 = vmatmul.f32.gmra.mxu0 %v170
  %v378 = vpop.f32.mrf.mxu0
  %v379 = vadd.f32 0.0, %v378
  %380 = vmatmul.f32.gmra.mxu0 %v173
  %v381 = vpop.f32.mrf.mxu0
  %v382 = vadd.f32 0.0, %v381
  %383 = vmatmul.f32.gmra.mxu0 %v176
  %v384 = vpop.f32.mrf.mxu0
  %v385 = vadd.f32 0.0, %v384
  %386 = vmatmul.f32.gmra.mxu0 %v179
  %v387 = vpop.f32.mrf.mxu0
  %v388 = vadd.f32 0.0, %v387
  %389 = vmatmul.f32.gmra.mxu0 %v182
  %v390 = vpop.f32.mrf.mxu0
  %v391 = vadd.f32 0.0, %v390
  %392 = vmatmul.f32.gmra.mxu0 %v185
  %v393 = vpop.f32.mrf.mxu0
  %v394 = vadd.f32 0.0, %v393
  %395 = vmatmul.f32.gmra.mxu0 %v188
  %v396 = vpop.f32.mrf.mxu0
  %v397 = vadd.f32 0.0, %v396
  %398 = vmatmul.f32.gmra.mxu0 %v191
  %v399 = vpop.f32.mrf.mxu0
  %v400 = vadd.f32 0.0, %v399
  %401 = vmatmul.f32.gmra.mxu0 %v194
  %v402 = vpop.f32.mrf.mxu0
  %v403 = vadd.f32 0.0, %v402
  %404 = vmatmul.f32.gmra.mxu0 %v197
  %v405 = vpop.f32.mrf.mxu0
  %v406 = vadd.f32 0.0, %v405
  %407 = vmatmul.f32.gmra.mxu0 %v200
  %v408 = vpop.f32.mrf.mxu0
  %v409 = vadd.f32 0.0, %v408
  %410 = vmatmul.f32.gmra.mxu0 %v203
  %v411 = vpop.f32.mrf.mxu0
  %v412 = vadd.f32 0.0, %v411
  %413 = vmatmul.f32.gmra.mxu0 %v206
  %v414 = vpop.f32.mrf.mxu0
  %v415 = vadd.f32 0.0, %v414
  %416 = vmatmul.f32.gmra.mxu0 %v209
  %v417 = vpop.f32.mrf.mxu0
  %v418 = vadd.f32 0.0, %v417
  %419 = vmatmul.f32.gmra.mxu0 %v212
  %v420 = vpop.f32.mrf.mxu0
  %v421 = vadd.f32 0.0, %v420
  %422 = vmatmul.f32.gmra.mxu0 %v215
  %v423 = vpop.f32.mrf.mxu0
  %v424 = vadd.f32 0.0, %v423
  %425 = vmatmul.f32.gmra.mxu0 %v218
  %v426 = vpop.f32.mrf.mxu0
  %v427 = vadd.f32 0.0, %v426
  %428 = vmatmul.f32.gmra.mxu0 %v221
  %v429 = vpop.f32.mrf.mxu0
  %v430 = vadd.f32 0.0, %v429
  %431 = vmatmul.f32.gmra.mxu0 %v224
  %v432 = vpop.f32.mrf.mxu0
  %v433 = vadd.f32 0.0, %v432
  %434 = vmatmul.f32.gmra.mxu0 %v227
  %v435 = vpop.f32.mrf.mxu0
  %v436 = vadd.f32 0.0, %v435
  %437 = vmatmul.f32.gmra.mxu0 %v230
  %v438 = vpop.f32.mrf.mxu0
  %v439 = vadd.f32 0.0, %v438
  %440 = vmatmul.f32.gmra.mxu0 %v233
  %v441 = vpop.f32.mrf.mxu0
  %v442 = vadd.f32 0.0, %v441
  %443 = vmatmul.f32.gmra.mxu0 %v236
  %v444 = vpop.f32.mrf.mxu0
  %v445 = vadd.f32 0.0, %v444
  %446 = vmatmul.f32.gmra.mxu0 %v239
  %v447 = vpop.f32.mrf.mxu0
  %v448 = vadd.f32 0.0, %v447
  %449 = vmatmul.f32.gmra.mxu0 %v242
  %v450 = vpop.f32.mrf.mxu0
  %v451 = vadd.f32 0.0, %v450
  %452 = vmatmul.f32.gmra.mxu0 %v245
  %v453 = vpop.f32.mrf.mxu0
  %v454 = vadd.f32 0.0, %v453
  %455 = vmatmul.f32.gmra.mxu0 %v248
  %v456 = vpop.f32.mrf.mxu0
  %v457 = vadd.f32 0.0, %v456
  %458 = vmatmul.f32.gmra.mxu0 %v251
  %v459 = vpop.f32.mrf.mxu0
  %v460 = vadd.f32 0.0, %v459
  %461 = vmatmul.f32.gmra.mxu0 %v254
  %v462 = vpop.f32.mrf.mxu0
  %v463 = vadd.f32 0.0, %v462
  %464 = vmatmul.f32.gmra.mxu0 %v257
  %v465 = vpop.f32.mrf.mxu0
  %v466 = vadd.f32 0.0, %v465
  %467 = vmatmul.f32.gmra.mxu0 %v260
  %v468 = vpop.f32.mrf.mxu0
  %v469 = vadd.f32 0.0, %v468
  %470 = vmatmul.f32.gmra.mxu0 %v263
  %v471 = vpop.f32.mrf.mxu0
  %v472 = vadd.f32 0.0, %v471
  %473 = vmatmul.f32.gmra.mxu0 %v266
  %v474 = vpop.f32.mrf.mxu0
  %v475 = vadd.f32 0.0, %v474
  %476 = vmatmul.f32.gmra.mxu0 %v269
  %v477 = vpop.f32.mrf.mxu0
  %v478 = vadd.f32 0.0, %v477
  %479 = vmatmul.f32.gmra.mxu0 %v272
  %v480 = vpop.f32.mrf.mxu0
  %v481 = vadd.f32 0.0, %v480
  %482 = vmatmul.f32.gmra.mxu0 %v275
  %v483 = vpop.f32.mrf.mxu0
  %v484 = vadd.f32 0.0, %v483
  %485 = vmatmul.f32.gmra.mxu0 %v278
  %v486 = vpop.f32.mrf.mxu0
  %v487 = vadd.f32 0.0, %v486
  %488 = vmatmul.f32.gmra.mxu0 %v281
  %v489 = vpop.f32.mrf.mxu0
  %v490 = vadd.f32 0.0, %v489
  %491 = vmatmul.f32.gmra.mxu0 %v284
  %v492 = vpop.f32.mrf.mxu0
  %v493 = vadd.f32 0.0, %v492
  %494 = vmatmul.f32.gmra.mxu0 %v287
  %v495 = vpop.f32.mrf.mxu0
  %v496 = vadd.f32 0.0, %v495
  %497 = vdwg.mxu0
  %v498 = vmul.f32 %v307, 0.2
  %v499 = vmul.f32 %v310, 0.2
  %v500 = vmul.f32 %v313, 0.2
  %v501 = vmul.f32 %v316, 0.2
  %v502 = vmul.f32 %v319, 0.2
  %v503 = vmul.f32 %v322, 0.2
  %v504 = vmul.f32 %v325, 0.2
  %v505 = vmul.f32 %v328, 0.2
  %v506 = vmul.f32 %v331, 0.2
  %v507 = vmul.f32 %v334, 0.2
  %v508 = vmul.f32 %v337, 0.2
  %v509 = vmul.f32 %v340, 0.2
  %v510 = vmul.f32 %v343, 0.2
  %v511 = vmul.f32 %v346, 0.2
  %v512 = vmul.f32 %v349, 0.2
  %v513 = vmul.f32 %v352, 0.2
  %v514 = vmul.f32 %v355, 0.2
  %v515 = vmul.f32 %v358, 0.2
  %v516 = vmul.f32 %v361, 0.2
  %v517 = vmul.f32 %v364, 0.2
  %v518 = vmul.f32 %v367, 0.2
  %v519 = vmul.f32 %v370, 0.2
  %v520 = vmul.f32 %v373, 0.2
  %v521 = vmul.f32 %v376, 0.2
  %v522 = vmul.f32 %v379, 0.2
  %v523 = vmul.f32 %v382, 0.2
  %v524 = vmul.f32 %v385, 0.2
  %v525 = vmul.f32 %v388, 0.2
  %v526 = vmul.f32 %v391, 0.2
  %v527 = vmul.f32 %v394, 0.2
  %v528 = vmul.f32 %v397, 0.2
  %v529 = vmul.f32 %v400, 0.2
  %v530 = vmul.f32 %v403, 0.2
  %v531 = vmul.f32 %v406, 0.2
  %v532 = vmul.f32 %v409, 0.2
  %v533 = vmul.f32 %v412, 0.2
  %v534 = vmul.f32 %v415, 0.2
  %v535 = vmul.f32 %v418, 0.2
  %v536 = vmul.f32 %v421, 0.2
  %v537 = vmul.f32 %v424, 0.2
  %v538 = vmul.f32 %v427, 0.2
  %v539 = vmul.f32 %v430, 0.2
  %v540 = vmul.f32 %v433, 0.2
  %v541 = vmul.f32 %v436, 0.2
  %v542 = vmul.f32 %v439, 0.2
  %v543 = vmul.f32 %v442, 0.2
  %v544 = vmul.f32 %v445, 0.2
  %v545 = vmul.f32 %v448, 0.2
  %v546 = vmul.f32 %v451, 0.2
  %v547 = vmul.f32 %v454, 0.2
  %v548 = vmul.f32 %v457, 0.2
  %v549 = vmul.f32 %v460, 0.2
  %v550 = vmul.f32 %v463, 0.2
  %v551 = vmul.f32 %v466, 0.2
  %v552 = vmul.f32 %v469, 0.2
  %v553 = vmul.f32 %v472, 0.2
  %v554 = vmul.f32 %v475, 0.2
  %v555 = vmul.f32 %v478, 0.2
  %v556 = vmul.f32 %v481, 0.2
  %v557 = vmul.f32 %v484, 0.2
  %v558 = vmul.f32 %v487, 0.2
  %v559 = vmul.f32 %v490, 0.2
  %v560 = vmul.f32 %v493, 0.2
  %v561 = vmul.f32 %v496, 0.2
  %v562 = vmax.f32 %v307, %v498
  %v563 = vmax.f32 %v310, %v499
  %v564 = vmax.f32 %v313, %v500
  %v565 = vmax.f32 %v316, %v501
  %v566 = vmax.f32 %v319, %v502
  %v567 = vmax.f32 %v322, %v503
  %v568 = vmax.f32 %v325, %v504
  %v569 = vmax.f32 %v328, %v505
  %v570 = vmax.f32 %v331, %v506
  %v571 = vmax.f32 %v334, %v507
  %v572 = vmax.f32 %v337, %v508
  %v573 = vmax.f32 %v340, %v509
  %v574 = vmax.f32 %v343, %v510
  %v575 = vmax.f32 %v346, %v511
  %v576 = vmax.f32 %v349, %v512
  %v577 = vmax.f32 %v352, %v513
  %v578 = vmax.f32 %v355, %v514
  %v579 = vmax.f32 %v358, %v515
  %v580 = vmax.f32 %v361, %v516
  %v581 = vmax.f32 %v364, %v517
  %v582 = vmax.f32 %v367, %v518
  %v583 = vmax.f32 %v370, %v519
  %v584 = vmax.f32 %v373, %v520
  %v585 = vmax.f32 %v376, %v521
  %v586 = vmax.f32 %v379, %v522
  %v587 = vmax.f32 %v382, %v523
  %v588 = vmax.f32 %v385, %v524
  %v589 = vmax.f32 %v388, %v525
  %v590 = vmax.f32 %v391, %v526
  %v591 = vmax.f32 %v394, %v527
  %v592 = vmax.f32 %v397, %v528
  %v593 = vmax.f32 %v400, %v529
  %v594 = vmax.f32 %v403, %v530
  %v595 = vmax.f32 %v406, %v531
  %v596 = vmax.f32 %v409, %v532
  %v597 = vmax.f32 %v412, %v533
  %v598 = vmax.f32 %v415, %v534
  %v599 = vmax.f32 %v418, %v535
  %v600 = vmax.f32 %v421, %v536
  %v601 = vmax.f32 %v424, %v537
  %v602 = vmax.f32 %v427, %v538
  %v603 = vmax.f32 %v430, %v539
  %v604 = vmax.f32 %v433, %v540
  %v605 = vmax.f32 %v436, %v541
  %v606 = vmax.f32 %v439, %v542
  %v607 = vmax.f32 %v442, %v543
  %v608 = vmax.f32 %v445, %v544
  %v609 = vmax.f32 %v448, %v545
  %v610 = vmax.f32 %v451, %v546
  %v611 = vmax.f32 %v454, %v547
  %v612 = vmax.f32 %v457, %v548
  %v613 = vmax.f32 %v460, %v549
  %v614 = vmax.f32 %v463, %v550
  %v615 = vmax.f32 %v466, %v551
  %v616 = vmax.f32 %v469, %v552
  %v617 = vmax.f32 %v472, %v553
  %v618 = vmax.f32 %v475, %v554
  %v619 = vmax.f32 %v478, %v555
  %v620 = vmax.f32 %v481, %v556
  %v621 = vmax.f32 %v484, %v557
  %v622 = vmax.f32 %v487, %v558
  %v623 = vmax.f32 %v490, %v559
  %v624 = vmax.f32 %v493, %v560
  %v625 = vmax.f32 %v496, %v561
  %vm626 = vcmask 64512
  %627 = vst.msk [vmem:[#allocation2] sm:$0xff] %vm626, %v562
  %628 = vst.msk [vmem:[#allocation2 + $0x8] sm:$0xff] %vm626, %v563
  %629 = vst.msk [vmem:[#allocation2 + $0x10] sm:$0xff] %vm626, %v564
  %630 = vst.msk [vmem:[#allocation2 + $0x18] sm:$0xff] %vm626, %v565
  %635 = vrot.lane.b32.xlu0 %v566, 8
  %v636 = vpop.permute.xlu0 %635
  %637 = vrot.lane.b32.xlu0 %v567, 8
  %v638 = vpop.permute.xlu0 %637
  %639 = vrot.lane.b32.xlu0 %v568, 8
  %v640 = vpop.permute.xlu0 %639
  %641 = vrot.lane.b32.xlu0 %v569, 8
  %v642 = vpop.permute.xlu0 %641
  %vm647 = vcmask 130112
  %648 = vst.msk [vmem:[#allocation2] sm:$0xff] %vm647, %v636
  %649 = vst.msk [vmem:[#allocation2 + $0x8] sm:$0xff] %vm647, %v638
  %650 = vst.msk [vmem:[#allocation2 + $0x10] sm:$0xff] %vm647, %v640
  %651 = vst.msk [vmem:[#allocation2 + $0x18] sm:$0xff] %vm647, %v642
  %656 = vrot.lane.b32.xlu0 %v570, 16
  %v657 = vpop.permute.xlu0 %656
  %658 = vrot.lane.b32.xlu0 %v571, 16
  %v659 = vpop.permute.xlu0 %658
  %660 = vrot.lane.b32.xlu0 %v572, 16
  %v661 = vpop.permute.xlu0 %660
  %662 = vrot.lane.b32.xlu0 %v573, 16
  %v663 = vpop.permute.xlu0 %662
  %vm668 = vcmask 195712
  %669 = vst.msk [vmem:[#allocation2] sm:$0xff] %vm668, %v657
  %670 = vst.msk [vmem:[#allocation2 + $0x8] sm:$0xff] %vm668, %v659
  %671 = vst.msk [vmem:[#allocation2 + $0x10] sm:$0xff] %vm668, %v661
  %672 = vst.msk [vmem:[#allocation2 + $0x18] sm:$0xff] %vm668, %v663
  %677 = vrot.lane.b32.xlu0 %v574, 24
  %v678 = vpop.permute.xlu0 %677
  %679 = vrot.lane.b32.xlu0 %v575, 24
  %v680 = vpop.permute.xlu0 %679
  %681 = vrot.lane.b32.xlu0 %v576, 24
  %v682 = vpop.permute.xlu0 %681
  %683 = vrot.lane.b32.xlu0 %v577, 24
  %v684 = vpop.permute.xlu0 %683
  %vm689 = vcmask 261312
  %690 = vst.msk [vmem:[#allocation2] sm:$0xff] %vm689, %v678
  %691 = vst.msk [vmem:[#allocation2 + $0x8] sm:$0xff] %vm689, %v680
  %692 = vst.msk [vmem:[#allocation2 + $0x10] sm:$0xff] %vm689, %v682
  %693 = vst.msk [vmem:[#allocation2 + $0x18] sm:$0xff] %vm689, %v684
  %698 = vrot.lane.b32.xlu0 %v578, 32
  %v699 = vpop.permute.xlu0 %698
  %700 = vrot.lane.b32.xlu0 %v579, 32
  %v701 = vpop.permute.xlu0 %700
  %702 = vrot.lane.b32.xlu0 %v580, 32
  %v703 = vpop.permute.xlu0 %702
  %704 = vrot.lane.b32.xlu0 %v581, 32
  %v705 = vpop.permute.xlu0 %704
  %vm710 = vcmask 326912
  %711 = vst.msk [vmem:[#allocation2] sm:$0xff] %vm710, %v699
  %712 = vst.msk [vmem:[#allocation2 + $0x8] sm:$0xff] %vm710, %v701
  %713 = vst.msk [vmem:[#allocation2 + $0x10] sm:$0xff] %vm710, %v703
  %714 = vst.msk [vmem:[#allocation2 + $0x18] sm:$0xff] %vm710, %v705
  %719 = vrot.lane.b32.xlu0 %v582, 40
  %v720 = vpop.permute.xlu0 %719
  %721 = vrot.lane.b32.xlu0 %v583, 40
  %v722 = vpop.permute.xlu0 %721
  %723 = vrot.lane.b32.xlu0 %v584, 40
  %v724 = vpop.permute.xlu0 %723
  %725 = vrot.lane.b32.xlu0 %v585, 40
  %v726 = vpop.permute.xlu0 %725
  %vm731 = vcmask 392512
  %732 = vst.msk [vmem:[#allocation2] sm:$0xff] %vm731, %v720
  %733 = vst.msk [vmem:[#allocation2 + $0x8] sm:$0xff] %vm731, %v722
  %734 = vst.msk [vmem:[#allocation2 + $0x10] sm:$0xff] %vm731, %v724
  %735 = vst.msk [vmem:[#allocation2 + $0x18] sm:$0xff] %vm731, %v726
  %740 = vrot.lane.b32.xlu0 %v586, 48
  %v741 = vpop.permute.xlu0 %740
  %742 = vrot.lane.b32.xlu0 %v587, 48
  %v743 = vpop.permute.xlu0 %742
  %744 = vrot.lane.b32.xlu0 %v588, 48
  %v745 = vpop.permute.xlu0 %744
  %746 = vrot.lane.b32.xlu0 %v589, 48
  %v747 = vpop.permute.xlu0 %746
  %vm752 = vcmask 458112
  %753 = vst.msk [vmem:[#allocation2] sm:$0xff] %vm752, %v741
  %754 = vst.msk [vmem:[#allocation2 + $0x8] sm:$0xff] %vm752, %v743
  %755 = vst.msk [vmem:[#allocation2 + $0x10] sm:$0xff] %vm752, %v745
  %756 = vst.msk [vmem:[#allocation2 + $0x18] sm:$0xff] %vm752, %v747
  %761 = vrot.lane.b32.xlu0 %v590, 56
  %v762 = vpop.permute.xlu0 %761
  %763 = vrot.lane.b32.xlu0 %v591, 56
  %v764 = vpop.permute.xlu0 %763
  %765 = vrot.lane.b32.xlu0 %v592, 56
  %v766 = vpop.permute.xlu0 %765
  %767 = vrot.lane.b32.xlu0 %v593, 56
  %v768 = vpop.permute.xlu0 %767
  %vm773 = vcmask 523712
  %774 = vst.msk [vmem:[#allocation2] sm:$0xff] %vm773, %v762
  %775 = vst.msk [vmem:[#allocation2 + $0x8] sm:$0xff] %vm773, %v764
  %776 = vst.msk [vmem:[#allocation2 + $0x10] sm:$0xff] %vm773, %v766
  %777 = vst.msk [vmem:[#allocation2 + $0x18] sm:$0xff] %vm773, %v768
  %782 = vrot.lane.b32.xlu0 %v594, 64
  %v783 = vpop.permute.xlu0 %782
  %784 = vrot.lane.b32.xlu0 %v595, 64
  %v785 = vpop.permute.xlu0 %784
  %786 = vrot.lane.b32.xlu0 %v596, 64
  %v787 = vpop.permute.xlu0 %786
  %788 = vrot.lane.b32.xlu0 %v597, 64
  %v789 = vpop.permute.xlu0 %788
  %vm794 = vcmask 589312
  %795 = vst.msk [vmem:[#allocation2] sm:$0xff] %vm794, %v783
  %796 = vst.msk [vmem:[#allocation2 + $0x8] sm:$0xff] %vm794, %v785
  %797 = vst.msk [vmem:[#allocation2 + $0x10] sm:$0xff] %vm794, %v787
  %798 = vst.msk [vmem:[#allocation2 + $0x18] sm:$0xff] %vm794, %v789
  %803 = vrot.lane.b32.xlu0 %v598, 72
  %v804 = vpop.permute.xlu0 %803
  %805 = vrot.lane.b32.xlu0 %v599, 72
  %v806 = vpop.permute.xlu0 %805
  %807 = vrot.lane.b32.xlu0 %v600, 72
  %v808 = vpop.permute.xlu0 %807
  %809 = vrot.lane.b32.xlu0 %v601, 72
  %v810 = vpop.permute.xlu0 %809
  %vm815 = vcmask 654912
  %816 = vst.msk [vmem:[#allocation2] sm:$0xff] %vm815, %v804
  %817 = vst.msk [vmem:[#allocation2 + $0x8] sm:$0xff] %vm815, %v806
  %818 = vst.msk [vmem:[#allocation2 + $0x10] sm:$0xff] %vm815, %v808
  %819 = vst.msk [vmem:[#allocation2 + $0x18] sm:$0xff] %vm815, %v810
  %824 = vrot.lane.b32.xlu0 %v602, 80
  %v825 = vpop.permute.xlu0 %824
  %826 = vrot.lane.b32.xlu0 %v603, 80
  %v827 = vpop.permute.xlu0 %826
  %828 = vrot.lane.b32.xlu0 %v604, 80
  %v829 = vpop.permute.xlu0 %828
  %830 = vrot.lane.b32.xlu0 %v605, 80
  %v831 = vpop.permute.xlu0 %830
  %vm836 = vcmask 720512
  %837 = vst.msk [vmem:[#allocation2] sm:$0xff] %vm836, %v825
  %838 = vst.msk [vmem:[#allocation2 + $0x8] sm:$0xff] %vm836, %v827
  %839 = vst.msk [vmem:[#allocation2 + $0x10] sm:$0xff] %vm836, %v829
  %840 = vst.msk [vmem:[#allocation2 + $0x18] sm:$0xff] %vm836, %v831
  %845 = vrot.lane.b32.xlu0 %v606, 88
  %v846 = vpop.permute.xlu0 %845
  %847 = vrot.lane.b32.xlu0 %v607, 88
  %v848 = vpop.permute.xlu0 %847
  %849 = vrot.lane.b32.xlu0 %v608, 88
  %v850 = vpop.permute.xlu0 %849
  %851 = vrot.lane.b32.xlu0 %v609, 88
  %v852 = vpop.permute.xlu0 %851
  %vm857 = vcmask 786112
  %858 = vst.msk [vmem:[#allocation2] sm:$0xff] %vm857, %v846
  %859 = vst.msk [vmem:[#allocation2 + $0x8] sm:$0xff] %vm857, %v848
  %860 = vst.msk [vmem:[#allocation2 + $0x10] sm:$0xff] %vm857, %v850
  %861 = vst.msk [vmem:[#allocation2 + $0x18] sm:$0xff] %vm857, %v852
  %866 = vrot.lane.b32.xlu0 %v610, 96
  %v867 = vpop.permute.xlu0 %866
  %868 = vrot.lane.b32.xlu0 %v611, 96
  %v869 = vpop.permute.xlu0 %868
  %870 = vrot.lane.b32.xlu0 %v612, 96
  %v871 = vpop.permute.xlu0 %870
  %872 = vrot.lane.b32.xlu0 %v613, 96
  %v873 = vpop.permute.xlu0 %872
  %vm878 = vcmask 851712
  %879 = vst.msk [vmem:[#allocation2] sm:$0xff] %vm878, %v867
  %880 = vst.msk [vmem:[#allocation2 + $0x8] sm:$0xff] %vm878, %v869
  %881 = vst.msk [vmem:[#allocation2 + $0x10] sm:$0xff] %vm878, %v871
  %882 = vst.msk [vmem:[#allocation2 + $0x18] sm:$0xff] %vm878, %v873
  %887 = vrot.lane.b32.xlu0 %v614, 104
  %v888 = vpop.permute.xlu0 %887
  %889 = vrot.lane.b32.xlu0 %v615, 104
  %v890 = vpop.permute.xlu0 %889
  %891 = vrot.lane.b32.xlu0 %v616, 104
  %v892 = vpop.permute.xlu0 %891
  %893 = vrot.lane.b32.xlu0 %v617, 104
  %v894 = vpop.permute.xlu0 %893
  %vm899 = vcmask 917312
  %900 = vst.msk [vmem:[#allocation2] sm:$0xff] %vm899, %v888
  %901 = vst.msk [vmem:[#allocation2 + $0x8] sm:$0xff] %vm899, %v890
  %902 = vst.msk [vmem:[#allocation2 + $0x10] sm:$0xff] %vm899, %v892
  %903 = vst.msk [vmem:[#allocation2 + $0x18] sm:$0xff] %vm899, %v894
  %908 = vrot.lane.b32.xlu0 %v618, 112
  %v909 = vpop.permute.xlu0 %908
  %910 = vrot.lane.b32.xlu0 %v619, 112
  %v911 = vpop.permute.xlu0 %910
  %912 = vrot.lane.b32.xlu0 %v620, 112
  %v913 = vpop.permute.xlu0 %912
  %914 = vrot.lane.b32.xlu0 %v621, 112
  %v915 = vpop.permute.xlu0 %914
  %vm920 = vcmask 982912
  %921 = vst.msk [vmem:[#allocation2] sm:$0xff] %vm920, %v909
  %922 = vst.msk [vmem:[#allocation2 + $0x8] sm:$0xff] %vm920, %v911
  %923 = vst.msk [vmem:[#allocation2 + $0x10] sm:$0xff] %vm920, %v913
  %924 = vst.msk [vmem:[#allocation2 + $0x18] sm:$0xff] %vm920, %v915
  %929 = vrot.lane.b32.xlu0 %v622, 120
  %v930 = vpop.permute.xlu0 %929
  %931 = vrot.lane.b32.xlu0 %v623, 120
  %v932 = vpop.permute.xlu0 %931
  %933 = vrot.lane.b32.xlu0 %v624, 120
  %v934 = vpop.permute.xlu0 %933
  %935 = vrot.lane.b32.xlu0 %v625, 120
  %v936 = vpop.permute.xlu0 %935
  %vm941 = vcmask 1048512
  %942 = vst.msk [vmem:[#allocation2] sm:$0xff] %vm941, %v930
  %943 = vst.msk [vmem:[#allocation2 + $0x8] sm:$0xff] %vm941, %v932
  %944 = vst.msk [vmem:[#allocation2 + $0x10] sm:$0xff] %vm941, %v934
  %945 = vst.msk [vmem:[#allocation2 + $0x18] sm:$0xff] %vm941, %v936
  %v946 = vld [vmem:[#allocation2] sm:$0xff]
  %v947 = vld [vmem:[#allocation2 + $0x8] sm:$0xff]
  %v948 = vld [vmem:[#allocation2 + $0x10] sm:$0xff]
  %v949 = vld [vmem:[#allocation2 + $0x18] sm:$0xff]
  %v950 = vld [vmem:[%s2] sm:$0xff]
  %v951 = vld [vmem:[%s2 + $0x8] sm:$0xff]
  %v952 = vld [vmem:[%s2 + $0x10] sm:$0xff]
  %v953 = vld [vmem:[%s2 + $0x18] sm:$0xff]
  %v954 = vld [vmem:[%s2 + $0x20] sm:$0xff]
  %v955 = vld [vmem:[%s2 + $0x28] sm:$0xff]
  %v956 = vld [vmem:[%s2 + $0x30] sm:$0xff]
  %v957 = vld [vmem:[%s2 + $0x38] sm:$0xff]
  %v958 = vld [vmem:[%s2 + $0x40] sm:$0xff]
  %v959 = vld [vmem:[%s2 + $0x48] sm:$0xff]
  %v960 = vld [vmem:[%s2 + $0x50] sm:$0xff]
  %v961 = vld [vmem:[%s2 + $0x58] sm:$0xff]
  %v962 = vld [vmem:[%s2 + $0x60] sm:$0xff]
  %v963 = vld [vmem:[%s2 + $0x68] sm:$0xff]
  %v964 = vld [vmem:[%s2 + $0x70] sm:$0xff]
  %v965 = vld [vmem:[%s2 + $0x78] sm:$0xff]
  %966 = vmatpush.msra.mxu0 %v965
  %967 = vmatpush.msra.mxu0 %v964
  %968 = vmatpush.msra.mxu0 %v963
  %969 = vmatpush.msra.mxu0 %v962
  %970 = vmatpush.msra.mxu0 %v961
  %971 = vmatpush.msra.mxu0 %v960
  %972 = vmatpush.msra.mxu0 %v959
  %973 = vmatpush.msra.mxu0 %v958
  %974 = vmatpush.msra.mxu0 %v957
  %975 = vmatpush.msra.mxu0 %v956
  %976 = vmatpush.msra.mxu0 %v955
  %977 = vmatpush.msra.mxu0 %v954
  %978 = vmatpush.msra.mxu0 %v953
  %979 = vmatpush.msra.mxu0 %v952
  %980 = vmatpush.msra.mxu0 %v951
  %981 = vmatpush.msra.mxu0 %v950
  %982 = vmatmul.f32.gmra.mxu0 %v946
  %v983 = vpop.f32.mrf.mxu0
  %v984 = vadd.f32 0.0, %v983
  %985 = vmatmul.f32.gmra.mxu0 %v947
  %v986 = vpop.f32.mrf.mxu0
  %v987 = vadd.f32 0.0, %v986
  %988 = vmatmul.f32.gmra.mxu0 %v948
  %v989 = vpop.f32.mrf.mxu0
  %v990 = vadd.f32 0.0, %v989
  %991 = vmatmul.f32.gmra.mxu0 %v949
  %v992 = vpop.f32.mrf.mxu0
  %v993 = vadd.f32 0.0, %v992
  %994 = vdwg.mxu0
  %vm995 = vcmask 130048
  %v996 = vsel %vm995, %v984, 0.0
  %v997 = vsel %vm995, %v987, 0.0
  %v998 = vadd.f32 %v996, %v997
  %v999 = vsel %vm995, %v990, 0.0
  %v1000 = vadd.f32 %v998, %v999
  %v1001 = vsel %vm995, %v993, 0.0
  %v1002 = vadd.f32 %v1000, %v1001
  %v1003 = vrot.slane %v1002, 4
  %v1004 = vadd.f32 %v1002, %v1003
  %v1005 = vrot.slane %v1004, 2
  %v1006 = vadd.f32 %v1004, %v1005
  %v1007 = vrot.slane %v1006, 1
  %v1008 = vadd.f32 %v1006, %v1007
  %v1009 = vmul.f32 %v1008, 0.03125
  %v1010 = vsub.f32 %v984, %v1009
  %v1011 = vsub.f32 %v987, %v1009
  %v1012 = vsub.f32 %v990, %v1009
  %v1013 = vsub.f32 %v993, %v1009
  %v1014 = vmul.f32 %v1010, %v1010
  %v1015 = vmul.f32 %v1011, %v1011
  %v1016 = vmul.f32 %v1012, %v1012
  %v1017 = vmul.f32 %v1013, %v1013
  %v1018 = vsel %vm995, %v1014, 0.0
  %v1019 = vsel %vm995, %v1015, 0.0
  %v1020 = vadd.f32 %v1018, %v1019
  %v1021 = vsel %vm995, %v1016, 0.0
  %v1022 = vadd.f32 %v1020, %v1021
  %v1023 = vsel %vm995, %v1017, 0.0
  %v1024 = vadd.f32 %v1022, %v1023
  %v1025 = vrot.slane %v1024, 4
  %v1026 = vadd.f32 %v1024, %v1025
  %v1027 = vrot.slane %v1026, 2
  %v1028 = vadd.f32 %v1026, %v1027
  %v1029 = vrot.slane %v1028, 1
  %v1030 = vadd.f32 %v1028, %v1029
  %v1031 = vmul.f32 %v1030, 0.03125
  %v1032 = vadd.f32 %v1031, 1e-05
  %v1033 = vrsqrt.pop %v1032
  %v1034 = vmul.f32 %v1033, %v1032
  %v1035 = vmul.f32 %v1034, %v1033
  %v1036 = vmul.f32 0.5, %v1035
  %v1037 = vsub.f32 1.5, %v1036
  %v1038 = vmul.f32 %v1033, %v1037
  %vm1039 = vweird.f32 %v1032
  %vm1040 = vweird.f32 %v1033
  %vm1041 = vmor %vm1039, %vm1040
  %v1042 = vsel %vm1041, %v1033, %v1038
  %v1043 = vmul.f32 %v1010, %v1042
  %v1044 = vmul.f32 %v1011, %v1042
  %v1045 = vmul.f32 %v1012, %v1042
  %v1046 = vmul.f32 %v1013, %v1042
  %v1047 = vld [vmem:[%s3] sm:$0x1]
  %v1049 = vperm.slane %v1047, 0
  %v1051 = vmul.f32 %v1043, %v1049
  %v1052 = vmul.f32 %v1044, %v1049
  %v1053 = vmul.f32 %v1045, %v1049
  %v1054 = vmul.f32 %v1046, %v1049
  %v1055 = vld [vmem:[%s4] sm:$0x1]
  %v1057 = vperm.slane %v1055, 0
  %v1059 = vadd.f32 %v1051, %v1057
  %v1060 = vadd.f32 %v1052, %v1057
  %v1061 = vadd.f32 %v1053, %v1057
  %v1062 = vadd.f32 %v1054, %v1057
  %v1063 = vmul.f32 %v1059, 0.2
  %v1064 = vmul.f32 %v1060, 0.2
  %v1065 = vmul.f32 %v1061, 0.2
  %v1066 = vmul.f32 %v1062, 0.2
  %v1067 = vmax.f32 %v1059, %v1063
  %v1068 = vmax.f32 %v1060, %v1064
  %v1069 = vmax.f32 %v1061, %v1065
  %v1070 = vmax.f32 %v1062, %v1066
  %1071 = vst [vmem:[#allocation3] sm:$0xff] 0.0
  %1072 = vst [vmem:[#allocation3 + $0x8] sm:$0xff] 0.0
  %vm1073 = vcmask 123904
  %1074 = vst.msk [vmem:[#allocation3] sm:$0x3] %vm1073, %v1067
  %v1076 = vrot.slane %v1067, 2
  %1077 = vrot.lane.b32.xlu0 %v1076, 16
  %v1078 = vpop.permute.xlu0 %1077
  %vm1080 = vcmask 255104
  %1081 = vst.msk [vmem:[#allocation3] sm:$0x3] %vm1080, %v1078
  %v1082 = vrot.slane %v1067, 4
  %1083 = vrot.lane.b32.xlu0 %v1082, 32
  %v1084 = vpop.permute.xlu0 %1083
  %vm1086 = vcmask 386304
  %1087 = vst.msk [vmem:[#allocation3] sm:$0x3] %vm1086, %v1084
  %v1088 = vrot.slane %v1067, 6
  %1089 = vrot.lane.b32.xlu0 %v1088, 48
  %v1090 = vpop.permute.xlu0 %1089
  %vm1092 = vcmask 517504
  %1093 = vst.msk [vmem:[#allocation3] sm:$0x3] %vm1092, %v1090
  %1095 = vrot.lane.b32.xlu0 %v1068, 64
  %v1096 = vpop.permute.xlu0 %1095
  %vm1098 = vcmask 648704
  %1099 = vst.msk [vmem:[#allocation3] sm:$0x3] %vm1098, %v1096
  %v1100 = vrot.slane %v1068, 2
  %1101 = vrot.lane.b32.xlu0 %v1100, 80
  %v1102 = vpop.permute.xlu0 %1101
  %vm1104 = vcmask 779904
  %1105 = vst.msk [vmem:[#allocation3] sm:$0x3] %vm1104, %v1102
  %v1106 = vrot.slane %v1068, 4
  %1107 = vrot.lane.b32.xlu0 %v1106, 96
  %v1108 = vpop.permute.xlu0 %1107
  %vm1110 = vcmask 911104
  %1111 = vst.msk [vmem:[#allocation3] sm:$0x3] %vm1110, %v1108
  %v1112 = vrot.slane %v1068, 6
  %1113 = vrot.lane.b32.xlu0 %v1112, 112
  %v1114 = vpop.permute.xlu0 %1113
  %vm1116 = vcmask 1042304
  %1117 = vst.msk [vmem:[#allocation3] sm:$0x3] %vm1116, %v1114
  %1118 = vst.msk [vmem:[#allocation3 + $0x8] sm:$0x3] %vm1073, %v1069
  %v1120 = vrot.slane %v1069, 2
  %1121 = vrot.lane.b32.xlu0 %v1120, 16
  %v1122 = vpop.permute.xlu0 %1121
  %1124 = vst.msk [vmem:[#allocation3 + $0x8] sm:$0x3] %vm1080, %v1122
  %v1125 = vrot.slane %v1069, 4
  %1126 = vrot.lane.b32.xlu0 %v1125, 32
  %v1127 = vpop.permute.xlu0 %1126
  %1129 = vst.msk [vmem:[#allocation3 + $0x8] sm:$0x3] %vm1086, %v1127
  %v1130 = vrot.slane %v1069, 6
  %1131 = vrot.lane.b32.xlu0 %v1130, 48
  %v1132 = vpop.permute.xlu0 %1131
  %1134 = vst.msk [vmem:[#allocation3 + $0x8] sm:$0x3] %vm1092, %v1132
  %1136 = vrot.lane.b32.xlu0 %v1070, 64
  %v1137 = vpop.permute.xlu0 %1136
  %1139 = vst.msk [vmem:[#allocation3 + $0x8] sm:$0x3] %vm1098, %v1137
  %v1140 = vrot.slane %v1070, 2
  %1141 = vrot.lane.b32.xlu0 %v1140, 80
  %v1142 = vpop.permute.xlu0 %1141
  %1144 = vst.msk [vmem:[#allocation3 + $0x8] sm:$0x3] %vm1104, %v1142
  %v1145 = vrot.slane %v1070, 4
  %1146 = vrot.lane.b32.xlu0 %v1145, 96
  %v1147 = vpop.permute.xlu0 %1146
  %1149 = vst.msk [vmem:[#allocation3 + $0x8] sm:$0x3] %vm1110, %v1147
  %v1150 = vrot.slane %v1070, 6
  %1151 = vrot.lane.b32.xlu0 %v1150, 112
  %v1152 = vpop.permute.xlu0 %1151
  %1154 = vst.msk [vmem:[#allocation3 + $0x8] sm:$0x3] %vm1116, %v1152
  %v1155 = vld [vmem:[#allocation3] sm:$0xff]
  %v1156 = vld [vmem:[#allocation3 + $0x8] sm:$0xff]
  %v1157 = vld [vmem:[%s5] sm:$0xff]
  %v1158 = vld [vmem:[%s5 + $0x8] sm:$0xff]
  %v1159 = vld [vmem:[%s5 + $0x10] sm:$0xff]
  %v1160 = vld [vmem:[%s5 + $0x18] sm:$0xff]
  %v1161 = vld [vmem:[%s5 + $0x20] sm:$0xff]
  %v1162 = vld [vmem:[%s5 + $0x28] sm:$0xff]
  %v1163 = vld [vmem:[%s5 + $0x30] sm:$0xff]
  %v1164 = vld [vmem:[%s5 + $0x38] sm:$0xff]
  %v1165 = vld [vmem:[%s5 + $0x40] sm:$0xff]
  %v1166 = vld [vmem:[%s5 + $0x48] sm:$0xff]
  %v1167 = vld [vmem:[%s5 + $0x50] sm:$0xff]
  %v1168 = vld [vmem:[%s5 + $0x58] sm:$0xff]
  %v1169 = vld [vmem:[%s5 + $0x60] sm:$0xff]
  %v1170 = vld [vmem:[%s5 + $0x68] sm:$0xff]
  %v1171 = vld [vmem:[%s5 + $0x70] sm:$0xff]
  %v1172 = vld [vmem:[%s5 + $0x78] sm:$0xff]
  %v1173 = vld [vmem:[%s5 + $0x80] sm:$0xff]
  %v1174 = vld [vmem:[%s5 + $0x88] sm:$0xff]
  %v1175 = vld [vmem:[%s5 + $0x90] sm:$0xff]
  %v1176 = vld [vmem:[%s5 + $0x98] sm:$0xff]
  %v1177 = vld [vmem:[%s5 + $0xa0] sm:$0xff]
  %v1178 = vld [vmem:[%s5 + $0xa8] sm:$0xff]
  %v1179 = vld [vmem:[%s5 + $0xb0] sm:$0xff]
  %v1180 = vld [vmem:[%s5 + $0xb8] sm:$0xff]
  %v1181 = vld [vmem:[%s5 + $0xc0] sm:$0xff]
  %v1182 = vld [vmem:[%s5 + $0xc8] sm:$0xff]
  %v1183 = vld [vmem:[%s5 + $0xd0] sm:$0xff]
  %v1184 = vld [vmem:[%s5 + $0xd8] sm:$0xff]
  %v1185 = vld [vmem:[%s5 + $0xe0] sm:$0xff]
  %v1186 = vld [vmem:[%s5 + $0xe8] sm:$0xff]
  %v1187 = vld [vmem:[%s5 + $0xf0] sm:$0xff]
  %v1188 = vld [vmem:[%s5 + $0xf8] sm:$0xff]
  %v1189 = vld [vmem:[%s6] sm:$0x1]
  %v1191 = vperm.slane %v1189, 0
  %1193 = vmatpush.msra.mxu0 %v1172
  %1194 = vmatpush.msra.mxu0 %v1171
  %1195 = vmatpush.msra.mxu0 %v1170
  %1196 = vmatpush.msra.mxu0 %v1169
  %1197 = vmatpush.msra.mxu0 %v1168
  %1198 = vmatpush.msra.mxu0 %v1167
  %1199 = vmatpush.msra.mxu0 %v1166
  %1200 = vmatpush.msra.mxu0 %v1165
  %1201 = vmatpush.msra.mxu0 %v1164
  %1202 = vmatpush.msra.mxu0 %v1163
  %1203 = vmatpush.msra.mxu0 %v1162
  %1204 = vmatpush.msra.mxu0 %v1161
  %1205 = vmatpush.msra.mxu0 %v1160
  %1206 = vmatpush.msra.mxu0 %v1159
  %1207 = vmatpush.msra.mxu0 %v1158
  %1208 = vmatpush.msra.mxu0 %v1157
  %1209 = vmatmul.f32.gmra.mxu0 %v1155
  %v1210 = vpop.f32.mrf.mxu0
  %v1211 = vadd.f32 %v1191, %v1210
  %1212 = vdwg.mxu0
  %1213 = vmatpush.msra.mxu0 %v1188
  %1214 = vmatpush.msra.mxu0 %v1187
  %1215 = vmatpush.msra.mxu0 %v1186
  %1216 = vmatpush.msra.mxu0 %v1185
  %1217 = vmatpush.msra.mxu0 %v1184
  %1218 = vmatpush.msra.mxu0 %v1183
  %1219 = vmatpush.msra.mxu0 %v1182
  %1220 = vmatpush.msra.mxu0 %v1181
  %1221 = vmatpush.msra.mxu0 %v1180
  %1222 = vmatpush.msra.mxu0 %v1179
  %1223 = vmatpush.msra.mxu0 %v1178
  %1224 = vmatpush.msra.mxu0 %v1177
  %1225 = vmatpush.msra.mxu0 %v1176
  %1226 = vmatpush.msra.mxu0 %v1175
  %1227 = vmatpush.msra.mxu0 %v1174
  %1228 = vmatpush.msra.mxu0 %v1173
  %1229 = vmatmul.f32.gmra.mxu0 %v1156
  %v1230 = vpop.f32.mrf.mxu0
  %v1231 = vadd.f32 %v1211, %v1230
  %1232 = vdwg.mxu0
  %1233 = vst [vmem:[%s7] sm:$0xff] %v1231
  // Predicated region
  $region30: #{encoder_forward.1} parent=0 // pred_check
    _
  $region31: #{encoder_forward.1} parent=0 // pred_check_branch
    %1235 = sbr.rel (0) target = $region33
  $region32: #{encoder_forward.1} parent=0 // pred_region
    _
  $region33: #{encoder_forward.1} parent=0 // pred_fallthru
    _
  // Predicated region
  $region34: #{encoder_forward.1} parent=0 // pred_check
    _
  $region35: #{encoder_forward.1} parent=0 // pred_check_branch
    %1237 = sbr.rel (0) target = $region37
  $region36: #{encoder_forward.1} parent=0 // pred_region
    _
  $region37: #{encoder_forward.1} parent=0 // pred_fallthru
    _

</llo_original>
